<compile_context>
chip_gen: v7x
topology: tpu7x:2x2x1
jax: 0.10.0
libtpu: 0.0.40
codegen_flags: <defaults>
</compile_context>

<pallas_src>
import functools

import jax
import jax.numpy as jnp
from jax.experimental import pallas as pl
from jax.experimental.pallas import tpu as pltpu


def _round_up(n, m):
    return ((n + m - 1) // m) * m


# ----------------------------- Pallas kernel ------------------------------ #
def _pairwise_blstm_kernel(
    x_ref,      # (tb, 256)
    w_ref,      # (tb, 36)
    hc_ref,     # (tb, 64)  = [h0 | c0]
    p1_ref,     # (257, 128) = [W1; b1]
    p1a_ref,    # (169, 128) = [W1a_x(128); W1a_w(36); zeros(4); b1a]
    p1b_ref,    # (129, 128) = [W1b; b1b]
    p1c_ref,    # (129, 64)  = [W1c_x(128); b1c + emb @ W1c_emb]
    p2_ref,     # (65, 32)   = [W2; b2]
    p3_ref,     # (33, 32)   = [W3; b3]
    plstm_ref,  # (65, 128)  = [Wih(32); Whh(32); bih + bhh]
    p4_ref,     # (33, 32)   = [W4; b4]
    p5_ref,     # (33, 32)   = [W5 padded to 32 lanes; b5 padded]
    out_ref,    # (tb, 128)  = [h_new | c_new | out32 | out32]
):
    def mm(a, wt):
        return jnp.dot(a, wt, preferred_element_type=jnp.float32)

    x = x_ref[...]
    w_in = w_ref[...]
    hc = hc_ref[...]
    h0 = hc[:, 0:32]
    c0 = hc[:, 32:64]

    # fc1 + relu
    a = jnp.maximum(mm(x, p1_ref[0:256, :]) + p1_ref[256:257, :], 0.0)       # (tb,128)
    # cat([a, w]) @ W1a  ==  a @ W1a[:128] + w @ W1a[128:164]
    a = jnp.maximum(
        mm(a, p1a_ref[0:128, :]) + mm(w_in, p1a_ref[128:164, :])
        + p1a_ref[168:169, :], 0.0)                                          # (tb,128)
    # fc1b + relu
    a = jnp.maximum(mm(a, p1b_ref[0:128, :]) + p1b_ref[128:129, :], 0.0)     # (tb,128)
    # cat([a, embedding]) @ W1c : embedding term pre-folded into the bias row
    a = jnp.maximum(mm(a, p1c_ref[0:128, :]) + p1c_ref[128:129, :], 0.0)     # (tb,64)
    # fc2, fc3
    a = jnp.maximum(mm(a, p2_ref[0:64, :]) + p2_ref[64:65, :], 0.0)          # (tb,32)
    a = jnp.maximum(mm(a, p3_ref[0:32, :]) + p3_ref[32:33, :], 0.0)          # (tb,32)

    # LSTMCell (PyTorch gate order: i, f, g, o); bih+bhh pre-summed in row 64
    gates = (mm(a, plstm_ref[0:32, :]) + mm(h0, plstm_ref[32:64, :])
             + plstm_ref[64:65, :])                                          # (tb,128)
    i_g = jax.nn.sigmoid(gates[:, 0:32])
    f_g = jax.nn.sigmoid(gates[:, 32:64])
    g_g = jnp.tanh(gates[:, 64:96])
    o_g = jax.nn.sigmoid(gates[:, 96:128])
    c_new = f_g * c0 + i_g * g_g
    h_new = o_g * jnp.tanh(c_new)

    # fc4 + relu, fc5 (padded to 32 output lanes; lane 0 is the real logit)
    a = jnp.maximum(mm(h_new, p4_ref[0:32, :]) + p4_ref[32:33, :], 0.0)      # (tb,32)
    out32 = jax.nn.sigmoid(mm(a, p5_ref[0:32, :]) + p5_ref[32:33, :])        # (tb,32)

    # Single lane-dense (tb,128) store: [h | c | out32 | out32]
    out_ref[...] = jnp.concatenate([h_new, c_new, out32, out32], axis=1)


# --------------------------- parameter handling ---------------------------- #
def init_params(key):
    """Deterministic synthetic parameters (PyTorch-Linear-style uniform init)."""
    def linear_p(key, fan_in, fan_out):
        k1, k2 = jax.random.split(key)
        bound = 1.0 / jnp.sqrt(fan_in)
        wt = jax.random.uniform(k1, (fan_in, fan_out), jnp.float32, -bound, bound)
        b = jax.random.uniform(k2, (1, fan_out), jnp.float32, -bound, bound)
        return wt, b

    keys = jax.random.split(key, 12)
    p = {}
    p["w1"], p["b1"] = linear_p(keys[0], 256, 128)
    p["w1a"], p["b1a"] = linear_p(keys[1], 164, 128)
    p["w1b"], p["b1b"] = linear_p(keys[2], 128, 128)
    p["w1c"], p["b1c"] = linear_p(keys[3], 140, 64)
    p["w2"], p["b2"] = linear_p(keys[4], 64, 32)
    p["w3"], p["b3"] = linear_p(keys[5], 32, 32)
    # LSTMCell params: weight_ih (4H,in) / weight_hh (4H,H), stored transposed (in,4H)
    p["wih"], p["bih"] = linear_p(keys[6], 32, 128)
    p["whh"], p["bhh"] = linear_p(keys[7], 32, 128)
    p["w4"], p["b4"] = linear_p(keys[8], 32, 32)
    p["w5"], p["b5"] = linear_p(keys[9], 32, 1)
    # EmbeddingModule(n=12).embedding (the n=36 action embedding is unused in forward)
    p["embedding"] = jax.random.normal(keys[10], (1, 12), jnp.float32)
    return p


def pack_params(p):
    """Pack every layer into a single (in+1, out) weight+bias slab (bias last,
    at an 8-aligned sublane offset); fold the constant-embedding matmul and
    the two LSTM biases host-side."""
    f32 = jnp.float32

    def row(b):
        return jnp.asarray(b, f32).reshape(1, -1)

    packed = {}
    packed["p1"] = jnp.concatenate([p["w1"], row(p["b1"])], axis=0)              # (257,128)
    packed["p1a"] = jnp.concatenate(
        [p["w1a"][:128], p["w1a"][128:164],
         jnp.zeros((4, 128), f32), row(p["b1a"])], axis=0)                       # (169,128)
    packed["p1b"] = jnp.concatenate([p["w1b"], row(p["b1b"])], axis=0)           # (129,128)
    b1c_eff = p["embedding"].reshape(1, 12) @ p["w1c"][128:140] + row(p["b1c"])
    packed["p1c"] = jnp.concatenate([p["w1c"][:128], b1c_eff], axis=0)           # (129,64)
    packed["p2"] = jnp.concatenate([p["w2"], row(p["b2"])], axis=0)              # (65,32)
    packed["p3"] = jnp.concatenate([p["w3"], row(p["b3"])], axis=0)              # (33,32)
    packed["plstm"] = jnp.concatenate(
        [p["wih"], p["whh"], row(p["bih"]) + row(p["bhh"])], axis=0)             # (65,128)
    packed["p4"] = jnp.concatenate([p["w4"], row(p["b4"])], axis=0)              # (33,32)
    w5_pad = jnp.zeros((32, 32), f32).at[:, 0:1].set(p["w5"])
    b5_pad = jnp.zeros((1, 32), f32).at[:, 0:1].set(row(p["b5"]))
    packed["p5"] = jnp.concatenate([w5_pad, b5_pad], axis=0)                     # (33,32)
    return packed


_PARAM_ORDER = ("p1", "p1a", "p1b", "p1c", "p2", "p3", "plstm", "p4", "p5")


# ------------------------------ JAX wrapper -------------------------------- #
@functools.partial(jax.jit, static_argnames=("tile_b",))
def pairwise_blstm_forward(x, w, h0, c0, packed, *, tile_b=128):
    """Batched forward.

    x:(B,256), w:(B,36), h0:(B,32), c0:(B,32) ->
      (prob:(B,1), h_new:(B,32), c_new:(B,32))
    """
    f32 = jnp.float32
    B = x.shape[0]
    tb = max(8, min(int(tile_b), _round_up(B, 8)))
    tb = _round_up(tb, 8)
    Bp = _round_up(B, tb)
    pad = Bp - B

    xp = jnp.pad(jnp.asarray(x, f32), ((0, pad), (0, 0)))
    wp = jnp.pad(jnp.asarray(w, f32), ((0, pad), (0, 0)))
    hc = jnp.concatenate([jnp.asarray(h0, f32), jnp.asarray(c0, f32)], axis=1)
    hcp = jnp.pad(hc, ((0, pad), (0, 0)))

    params = [packed[k] for k in _PARAM_ORDER]

    in_specs = [
        pl.BlockSpec((tb, 256), lambda i: (i, 0)),
        pl.BlockSpec((tb, 36), lambda i: (i, 0)),
        pl.BlockSpec((tb, 64), lambda i: (i, 0)),
    ] + [pl.BlockSpec(prm.shape, lambda i: (0, 0)) for prm in params]

    slab = pl.pallas_call(
        _pairwise_blstm_kernel,
        out_shape=jax.ShapeDtypeStruct((Bp, 128), f32),
        grid=(Bp // tb,),
        in_specs=in_specs,
        out_specs=pl.BlockSpec((tb, 128), lambda i: (i, 0)),
        compiler_params=pltpu.CompilerParams(
            dimension_semantics=("parallel",)),
    )(xp, wp, hcp, *params)

    h_new = slab[:B, 0:32]
    c_new = slab[:B, 32:64]
    out = slab[:B, 64:65]
    return out, h_new, c_new


# ----------------------- pure-JAX reference (sanity) ----------------------- #
def reference_forward(x, w, h0, c0, p):
    a = jax.nn.relu(x @ p["w1"] + p["b1"])
    a = jnp.concatenate([a, w], axis=1)                        # torch.cat(dim=0) on 1-D
    a = jax.nn.relu(a @ p["w1a"] + p["b1a"])
    a = jax.nn.relu(a @ p["w1b"] + p["b1b"])
    emb = jnp.broadcast_to(p["embedding"].reshape(1, 12), (a.shape[0], 12))
    a = jnp.concatenate([a, emb], axis=1)
    a = jax.nn.relu(a @ p["w1c"] + p["b1c"])
    a = jax.nn.relu(a @ p["w2"] + p["b2"])
    a = jax.nn.relu(a @ p["w3"] + p["b3"])
    gates = a @ p["wih"] + h0 @ p["whh"] + p["bih"] + p["bhh"]
    i_g = jax.nn.sigmoid(gates[:, 0:32])
    f_g = jax.nn.sigmoid(gates[:, 32:64])
    g_g = jnp.tanh(gates[:, 64:96])
    o_g = jax.nn.sigmoid(gates[:, 96:128])
    c_new = f_g * c0 + i_g * g_g
    h_new = o_g * jnp.tanh(c_new)
    a = jax.nn.relu(h_new @ p["w4"] + p["b4"])
    return jax.nn.sigmoid(a @ p["w5"] + p["b5"]), h_new, c_new


if __name__ == "__main__":
    key = jax.random.PRNGKey(0)
    k_x, k_w, k_h, k_c, k_p = jax.random.split(key, 5)

    B = 16  # small batch of pairs; kernel grid = 2 tiles of 8 rows
    x = jax.random.normal(k_x, (B, 256), jnp.float32)
    w = jax.random.normal(k_w, (B, 36), jnp.float32)
    h0 = jax.random.normal(k_h, (B, 32), jnp.float32)
    c0 = jax.random.normal(k_c, (B, 32), jnp.float32)

    params = init_params(k_p)
    packed = pack_params(params)

    out, h_new, c_new = pairwise_blstm_forward(x, w, h0, c0, packed, tile_b=8)
    jax.block_until_ready((out, h_new, c_new))

    ref_out, ref_h, ref_c = reference_forward(x, w, h0, c0, params)
    assert out.shape == (B, 1)
    assert jnp.allclose(out, ref_out, atol=1e-4), (out, ref_out)
    assert jnp.allclose(h_new, ref_h, atol=1e-4)
    assert jnp.allclose(c_new, ref_c, atol=1e-4)

    print("KERNEL_OK")
</pallas_src>

<mosaic_0001>
module attributes {stable_mosaic.version = 11 : i64} {
  func.func @_pairwise_blstm_kernel(%arg0: i32, %arg1: memref<8x256xf32, #tpu.memory_space<vmem>>, %arg2: memref<8x36xf32, #tpu.memory_space<vmem>>, %arg3: memref<8x64xf32, #tpu.memory_space<vmem>>, %arg4: memref<257x128xf32, #tpu.memory_space<vmem>>, %arg5: memref<169x128xf32, #tpu.memory_space<vmem>>, %arg6: memref<129x128xf32, #tpu.memory_space<vmem>>, %arg7: memref<129x64xf32, #tpu.memory_space<vmem>>, %arg8: memref<65x32xf32, #tpu.memory_space<vmem>>, %arg9: memref<33x32xf32, #tpu.memory_space<vmem>>, %arg10: memref<65x128xf32, #tpu.memory_space<vmem>>, %arg11: memref<33x32xf32, #tpu.memory_space<vmem>>, %arg12: memref<33x32xf32, #tpu.memory_space<vmem>>, %arg13: memref<8x128xf32, #tpu.memory_space<vmem>>) attributes {dimension_semantics = [#tpu.dimension_semantics<parallel>], iteration_bounds = array<i64: 2>, scalar_prefetch = 0 : i64, scratch_operands = 0 : i64, tpu.core_type = #tpu.core_type<tc>, window_params = [{transform_indices = @transform_0, window_bounds = array<i64: 8, 256>}, {transform_indices = @transform_1, window_bounds = array<i64: 8, 36>}, {transform_indices = @transform_2, window_bounds = array<i64: 8, 64>}, {pipeline_mode = #tpu.pipeline_mode<synchronous>, transform_indices = @transform_3, window_bounds = array<i64: 257, 128>}, {pipeline_mode = #tpu.pipeline_mode<synchronous>, transform_indices = @transform_4, window_bounds = array<i64: 169, 128>}, {pipeline_mode = #tpu.pipeline_mode<synchronous>, transform_indices = @transform_5, window_bounds = array<i64: 129, 128>}, {pipeline_mode = #tpu.pipeline_mode<synchronous>, transform_indices = @transform_6, window_bounds = array<i64: 129, 64>}, {pipeline_mode = #tpu.pipeline_mode<synchronous>, transform_indices = @transform_7, window_bounds = array<i64: 65, 32>}, {pipeline_mode = #tpu.pipeline_mode<synchronous>, transform_indices = @transform_8, window_bounds = array<i64: 33, 32>}, {pipeline_mode = #tpu.pipeline_mode<synchronous>, transform_indices = @transform_9, window_bounds = array<i64: 65, 128>}, {pipeline_mode = #tpu.pipeline_mode<synchronous>, transform_indices = @transform_10, window_bounds = array<i64: 33, 32>}, {pipeline_mode = #tpu.pipeline_mode<synchronous>, transform_indices = @transform_11, window_bounds = array<i64: 33, 32>}, {transform_indices = @transform_12, window_bounds = array<i64: 8, 128>}]} {
    %c0 = arith.constant 0 : index
    %c0_0 = arith.constant 0 : index
    %0 = vector.load %arg1[%c0, %c0_0] : memref<8x256xf32, #tpu.memory_space<vmem>>, vector<8x256xf32>
    %c0_1 = arith.constant 0 : index
    %c0_2 = arith.constant 0 : index
    %1 = vector.load %arg2[%c0_1, %c0_2] : memref<8x36xf32, #tpu.memory_space<vmem>>, vector<8x36xf32>
    %c0_3 = arith.constant 0 : index
    %c0_4 = arith.constant 0 : index
    %2 = vector.load %arg3[%c0_3, %c0_4] : memref<8x64xf32, #tpu.memory_space<vmem>>, vector<8x64xf32>
    %3 = vector.extract_strided_slice %2 {offsets = [0, 0], sizes = [8, 32], strides = [1, 1]} : vector<8x64xf32> to vector<8x32xf32>
    %4 = vector.extract_strided_slice %2 {offsets = [0, 32], sizes = [8, 32], strides = [1, 1]} : vector<8x64xf32> to vector<8x32xf32>
    %c0_5 = arith.constant 0 : index
    %c0_6 = arith.constant 0 : index
    %5 = vector.load %arg4[%c0_5, %c0_6] : memref<257x128xf32, #tpu.memory_space<vmem>>, vector<256x128xf32>
    %cst = arith.constant dense<0.000000e+00> : vector<8x128xf32>
    %6 = tpu.matmul %0, %5, %cst {dimension_numbers = #tpu.dot_dimension_numbers<[1], [0], [0], [1], [0, 0, 1, 1], [], []>} : vector<8x256xf32>, vector<256x128xf32>, vector<8x128xf32> -> vector<8x128xf32>
    %c256 = arith.constant 256 : index
    %c0_7 = arith.constant 0 : index
    %7 = vector.load %arg4[%c256, %c0_7] : memref<257x128xf32, #tpu.memory_space<vmem>>, vector<1x128xf32>
    %8 = vector.broadcast %7 : vector<1x128xf32> to vector<8x128xf32>
    %9 = arith.addf %6, %8 : vector<8x128xf32>
    %cst_8 = arith.constant 0.000000e+00 : f32
    %10 = vector.broadcast %cst_8 : f32 to vector<8x128xf32>
    %11 = arith.maximumf %9, %10 : vector<8x128xf32>
    %c0_9 = arith.constant 0 : index
    %c0_10 = arith.constant 0 : index
    %12 = vector.load %arg5[%c0_9, %c0_10] : memref<169x128xf32, #tpu.memory_space<vmem>>, vector<128x128xf32>
    %cst_11 = arith.constant dense<0.000000e+00> : vector<8x128xf32>
    %13 = tpu.matmul %11, %12, %cst_11 {dimension_numbers = #tpu.dot_dimension_numbers<[1], [0], [0], [1], [0, 0, 1, 1], [], []>} : vector<8x128xf32>, vector<128x128xf32>, vector<8x128xf32> -> vector<8x128xf32>
    %c128 = arith.constant 128 : index
    %c0_12 = arith.constant 0 : index
    %14 = vector.load %arg5[%c128, %c0_12] : memref<169x128xf32, #tpu.memory_space<vmem>>, vector<36x128xf32>
    %cst_13 = arith.constant dense<0.000000e+00> : vector<8x128xf32>
    %15 = tpu.matmul %1, %14, %cst_13 {dimension_numbers = #tpu.dot_dimension_numbers<[1], [0], [0], [1], [0, 0, 1, 1], [], []>} : vector<8x36xf32>, vector<36x128xf32>, vector<8x128xf32> -> vector<8x128xf32>
    %16 = arith.addf %13, %15 : vector<8x128xf32>
    %c168 = arith.constant 168 : index
    %c0_14 = arith.constant 0 : index
    %17 = vector.load %arg5[%c168, %c0_14] : memref<169x128xf32, #tpu.memory_space<vmem>>, vector<1x128xf32>
    %18 = vector.broadcast %17 : vector<1x128xf32> to vector<8x128xf32>
    %19 = arith.addf %16, %18 : vector<8x128xf32>
    %cst_15 = arith.constant 0.000000e+00 : f32
    %20 = vector.broadcast %cst_15 : f32 to vector<8x128xf32>
    %21 = arith.maximumf %19, %20 : vector<8x128xf32>
    %c0_16 = arith.constant 0 : index
    %c0_17 = arith.constant 0 : index
    %22 = vector.load %arg6[%c0_16, %c0_17] : memref<129x128xf32, #tpu.memory_space<vmem>>, vector<128x128xf32>
    %cst_18 = arith.constant dense<0.000000e+00> : vector<8x128xf32>
    %23 = tpu.matmul %21, %22, %cst_18 {dimension_numbers = #tpu.dot_dimension_numbers<[1], [0], [0], [1], [0, 0, 1, 1], [], []>} : vector<8x128xf32>, vector<128x128xf32>, vector<8x128xf32> -> vector<8x128xf32>
    %c128_19 = arith.constant 128 : index
    %c0_20 = arith.constant 0 : index
    %24 = vector.load %arg6[%c128_19, %c0_20] : memref<129x128xf32, #tpu.memory_space<vmem>>, vector<1x128xf32>
    %25 = vector.broadcast %24 : vector<1x128xf32> to vector<8x128xf32>
    %26 = arith.addf %23, %25 : vector<8x128xf32>
    %cst_21 = arith.constant 0.000000e+00 : f32
    %27 = vector.broadcast %cst_21 : f32 to vector<8x128xf32>
    %28 = arith.maximumf %26, %27 : vector<8x128xf32>
    %c0_22 = arith.constant 0 : index
    %c0_23 = arith.constant 0 : index
    %29 = vector.load %arg7[%c0_22, %c0_23] : memref<129x64xf32, #tpu.memory_space<vmem>>, vector<128x64xf32>
    %cst_24 = arith.constant dense<0.000000e+00> : vector<8x64xf32>
    %30 = tpu.matmul %28, %29, %cst_24 {dimension_numbers = #tpu.dot_dimension_numbers<[1], [0], [0], [1], [0, 0, 1, 1], [], []>} : vector<8x128xf32>, vector<128x64xf32>, vector<8x64xf32> -> vector<8x64xf32>
    %c128_25 = arith.constant 128 : index
    %c0_26 = arith.constant 0 : index
    %31 = vector.load %arg7[%c128_25, %c0_26] : memref<129x64xf32, #tpu.memory_space<vmem>>, vector<1x64xf32>
    %32 = vector.broadcast %31 : vector<1x64xf32> to vector<8x64xf32>
    %33 = arith.addf %30, %32 : vector<8x64xf32>
    %cst_27 = arith.constant 0.000000e+00 : f32
    %34 = vector.broadcast %cst_27 : f32 to vector<8x64xf32>
    %35 = arith.maximumf %33, %34 : vector<8x64xf32>
    %c0_28 = arith.constant 0 : index
    %c0_29 = arith.constant 0 : index
    %36 = vector.load %arg8[%c0_28, %c0_29] : memref<65x32xf32, #tpu.memory_space<vmem>>, vector<64x32xf32>
    %cst_30 = arith.constant dense<0.000000e+00> : vector<8x32xf32>
    %37 = tpu.matmul %35, %36, %cst_30 {dimension_numbers = #tpu.dot_dimension_numbers<[1], [0], [0], [1], [0, 0, 1, 1], [], []>} : vector<8x64xf32>, vector<64x32xf32>, vector<8x32xf32> -> vector<8x32xf32>
    %c64 = arith.constant 64 : index
    %c0_31 = arith.constant 0 : index
    %38 = vector.load %arg8[%c64, %c0_31] : memref<65x32xf32, #tpu.memory_space<vmem>>, vector<1x32xf32>
    %39 = vector.broadcast %38 : vector<1x32xf32> to vector<8x32xf32>
    %40 = arith.addf %37, %39 : vector<8x32xf32>
    %cst_32 = arith.constant 0.000000e+00 : f32
    %41 = vector.broadcast %cst_32 : f32 to vector<8x32xf32>
    %42 = arith.maximumf %40, %41 : vector<8x32xf32>
    %c0_33 = arith.constant 0 : index
    %c0_34 = arith.constant 0 : index
    %43 = vector.load %arg9[%c0_33, %c0_34] : memref<33x32xf32, #tpu.memory_space<vmem>>, vector<32x32xf32>
    %cst_35 = arith.constant dense<0.000000e+00> : vector<8x32xf32>
    %44 = tpu.matmul %42, %43, %cst_35 {dimension_numbers = #tpu.dot_dimension_numbers<[1], [0], [0], [1], [0, 0, 1, 1], [], []>} : vector<8x32xf32>, vector<32x32xf32>, vector<8x32xf32> -> vector<8x32xf32>
    %c32 = arith.constant 32 : index
    %c0_36 = arith.constant 0 : index
    %45 = vector.load %arg9[%c32, %c0_36] : memref<33x32xf32, #tpu.memory_space<vmem>>, vector<1x32xf32>
    %46 = vector.broadcast %45 : vector<1x32xf32> to vector<8x32xf32>
    %47 = arith.addf %44, %46 : vector<8x32xf32>
    %cst_37 = arith.constant 0.000000e+00 : f32
    %48 = vector.broadcast %cst_37 : f32 to vector<8x32xf32>
    %49 = arith.maximumf %47, %48 : vector<8x32xf32>
    %c0_38 = arith.constant 0 : index
    %c0_39 = arith.constant 0 : index
    %50 = vector.load %arg10[%c0_38, %c0_39] : memref<65x128xf32, #tpu.memory_space<vmem>>, vector<32x128xf32>
    %cst_40 = arith.constant dense<0.000000e+00> : vector<8x128xf32>
    %51 = tpu.matmul %49, %50, %cst_40 {dimension_numbers = #tpu.dot_dimension_numbers<[1], [0], [0], [1], [0, 0, 1, 1], [], []>} : vector<8x32xf32>, vector<32x128xf32>, vector<8x128xf32> -> vector<8x128xf32>
    %c32_41 = arith.constant 32 : index
    %c0_42 = arith.constant 0 : index
    %52 = vector.load %arg10[%c32_41, %c0_42] : memref<65x128xf32, #tpu.memory_space<vmem>>, vector<32x128xf32>
    %cst_43 = arith.constant dense<0.000000e+00> : vector<8x128xf32>
    %53 = tpu.matmul %3, %52, %cst_43 {dimension_numbers = #tpu.dot_dimension_numbers<[1], [0], [0], [1], [0, 0, 1, 1], [], []>} : vector<8x32xf32>, vector<32x128xf32>, vector<8x128xf32> -> vector<8x128xf32>
    %54 = arith.addf %51, %53 : vector<8x128xf32>
    %c64_44 = arith.constant 64 : index
    %c0_45 = arith.constant 0 : index
    %55 = vector.load %arg10[%c64_44, %c0_45] : memref<65x128xf32, #tpu.memory_space<vmem>>, vector<1x128xf32>
    %56 = vector.broadcast %55 : vector<1x128xf32> to vector<8x128xf32>
    %57 = arith.addf %54, %56 : vector<8x128xf32>
    %58 = vector.extract_strided_slice %57 {offsets = [0, 0], sizes = [8, 32], strides = [1, 1]} : vector<8x128xf32> to vector<8x32xf32>
    %59 = arith.negf %58 : vector<8x32xf32>
    %60 = math.exp %59 : vector<8x32xf32>
    %cst_46 = arith.constant 1.000000e+00 : f32
    %61 = vector.broadcast %cst_46 : f32 to vector<8x32xf32>
    %62 = arith.addf %61, %60 : vector<8x32xf32>
    %63 = arith.divf %61, %62 : vector<8x32xf32>
    %64 = vector.extract_strided_slice %57 {offsets = [0, 32], sizes = [8, 32], strides = [1, 1]} : vector<8x128xf32> to vector<8x32xf32>
    %65 = arith.negf %64 : vector<8x32xf32>
    %66 = math.exp %65 : vector<8x32xf32>
    %cst_47 = arith.constant 1.000000e+00 : f32
    %67 = vector.broadcast %cst_47 : f32 to vector<8x32xf32>
    %68 = arith.addf %67, %66 : vector<8x32xf32>
    %69 = arith.divf %67, %68 : vector<8x32xf32>
    %70 = vector.extract_strided_slice %57 {offsets = [0, 64], sizes = [8, 32], strides = [1, 1]} : vector<8x128xf32> to vector<8x32xf32>
    %71 = math.tanh %70 : vector<8x32xf32>
    %72 = vector.extract_strided_slice %57 {offsets = [0, 96], sizes = [8, 32], strides = [1, 1]} : vector<8x128xf32> to vector<8x32xf32>
    %73 = arith.negf %72 : vector<8x32xf32>
    %74 = math.exp %73 : vector<8x32xf32>
    %cst_48 = arith.constant 1.000000e+00 : f32
    %75 = vector.broadcast %cst_48 : f32 to vector<8x32xf32>
    %76 = arith.addf %75, %74 : vector<8x32xf32>
    %77 = arith.divf %75, %76 : vector<8x32xf32>
    %78 = arith.mulf %69, %4 : vector<8x32xf32>
    %79 = arith.mulf %63, %71 : vector<8x32xf32>
    %80 = arith.addf %78, %79 : vector<8x32xf32>
    %81 = math.tanh %80 : vector<8x32xf32>
    %82 = arith.mulf %77, %81 : vector<8x32xf32>
    %c0_49 = arith.constant 0 : index
    %c0_50 = arith.constant 0 : index
    %83 = vector.load %arg11[%c0_49, %c0_50] : memref<33x32xf32, #tpu.memory_space<vmem>>, vector<32x32xf32>
    %cst_51 = arith.constant dense<0.000000e+00> : vector<8x32xf32>
    %84 = tpu.matmul %82, %83, %cst_51 {dimension_numbers = #tpu.dot_dimension_numbers<[1], [0], [0], [1], [0, 0, 1, 1], [], []>} : vector<8x32xf32>, vector<32x32xf32>, vector<8x32xf32> -> vector<8x32xf32>
    %c32_52 = arith.constant 32 : index
    %c0_53 = arith.constant 0 : index
    %85 = vector.load %arg11[%c32_52, %c0_53] : memref<33x32xf32, #tpu.memory_space<vmem>>, vector<1x32xf32>
    %86 = vector.broadcast %85 : vector<1x32xf32> to vector<8x32xf32>
    %87 = arith.addf %84, %86 : vector<8x32xf32>
    %cst_54 = arith.constant 0.000000e+00 : f32
    %88 = vector.broadcast %cst_54 : f32 to vector<8x32xf32>
    %89 = arith.maximumf %87, %88 : vector<8x32xf32>
    %c0_55 = arith.constant 0 : index
    %c0_56 = arith.constant 0 : index
    %90 = vector.load %arg12[%c0_55, %c0_56] : memref<33x32xf32, #tpu.memory_space<vmem>>, vector<32x32xf32>
    %cst_57 = arith.constant dense<0.000000e+00> : vector<8x32xf32>
    %91 = tpu.matmul %89, %90, %cst_57 {dimension_numbers = #tpu.dot_dimension_numbers<[1], [0], [0], [1], [0, 0, 1, 1], [], []>} : vector<8x32xf32>, vector<32x32xf32>, vector<8x32xf32> -> vector<8x32xf32>
    %c32_58 = arith.constant 32 : index
    %c0_59 = arith.constant 0 : index
    %92 = vector.load %arg12[%c32_58, %c0_59] : memref<33x32xf32, #tpu.memory_space<vmem>>, vector<1x32xf32>
    %93 = vector.broadcast %92 : vector<1x32xf32> to vector<8x32xf32>
    %94 = arith.addf %91, %93 : vector<8x32xf32>
    %95 = arith.negf %94 : vector<8x32xf32>
    %96 = math.exp %95 : vector<8x32xf32>
    %cst_60 = arith.constant 1.000000e+00 : f32
    %97 = vector.broadcast %cst_60 : f32 to vector<8x32xf32>
    %98 = arith.addf %97, %96 : vector<8x32xf32>
    %99 = arith.divf %97, %98 : vector<8x32xf32>
    %100 = tpu.concatenate %82, %80, %99, %99 in 1 : vector<8x32xf32>, vector<8x32xf32>, vector<8x32xf32>, vector<8x32xf32> -> vector<8x128xf32>
    %c0_61 = arith.constant 0 : index
    %c0_62 = arith.constant 0 : index
    %101 = vector.load %arg13[%c0_61, %c0_62] : memref<8x128xf32, #tpu.memory_space<vmem>>, vector<8x128xf32>
    tpu.vector_store %arg13[%c0_61, %c0_62], %100 {strides = array<i32>} : memref<8x128xf32, #tpu.memory_space<vmem>>, vector<8x128xf32>,
    return
  }
  func.func @transform_0(%arg0: i32) -> (i32, i32) {
    %c0_i32 = arith.constant 0 : i32
    %c0_i32_0 = arith.constant 0 : i32
    return %arg0, %c0_i32 : i32, i32
  }
  func.func @transform_1(%arg0: i32) -> (i32, i32) {
    %c0_i32 = arith.constant 0 : i32
    %c0_i32_0 = arith.constant 0 : i32
    return %arg0, %c0_i32 : i32, i32
  }
  func.func @transform_2(%arg0: i32) -> (i32, i32) {
    %c0_i32 = arith.constant 0 : i32
    %c0_i32_0 = arith.constant 0 : i32
    return %arg0, %c0_i32 : i32, i32
  }
  func.func @transform_3(%arg0: i32) -> (i32, i32) {
    %c0_i32 = arith.constant 0 : i32
    %c0_i32_0 = arith.constant 0 : i32
    %c0_i32_1 = arith.constant 0 : i32
    return %c0_i32, %c0_i32_0 : i32, i32
  }
  func.func @transform_4(%arg0: i32) -> (i32, i32) {
    %c0_i32 = arith.constant 0 : i32
    %c0_i32_0 = arith.constant 0 : i32
    %c0_i32_1 = arith.constant 0 : i32
    return %c0_i32, %c0_i32_0 : i32, i32
  }
  func.func @transform_5(%arg0: i32) -> (i32, i32) {
    %c0_i32 = arith.constant 0 : i32
    %c0_i32_0 = arith.constant 0 : i32
    %c0_i32_1 = arith.constant 0 : i32
    return %c0_i32, %c0_i32_0 : i32, i32
  }
  func.func @transform_6(%arg0: i32) -> (i32, i32) {
    %c0_i32 = arith.constant 0 : i32
    %c0_i32_0 = arith.constant 0 : i32
    %c0_i32_1 = arith.constant 0 : i32
    return %c0_i32, %c0_i32_0 : i32, i32
  }
  func.func @transform_7(%arg0: i32) -> (i32, i32) {
    %c0_i32 = arith.constant 0 : i32
    %c0_i32_0 = arith.constant 0 : i32
    %c0_i32_1 = arith.constant 0 : i32
    return %c0_i32, %c0_i32_0 : i32, i32
  }
  func.func @transform_8(%arg0: i32) -> (i32, i32) {
    %c0_i32 = arith.constant 0 : i32
    %c0_i32_0 = arith.constant 0 : i32
    %c0_i32_1 = arith.constant 0 : i32
    return %c0_i32, %c0_i32_0 : i32, i32
  }
  func.func @transform_9(%arg0: i32) -> (i32, i32) {
    %c0_i32 = arith.constant 0 : i32
    %c0_i32_0 = arith.constant 0 : i32
    %c0_i32_1 = arith.constant 0 : i32
    return %c0_i32, %c0_i32_0 : i32, i32
  }
  func.func @transform_10(%arg0: i32) -> (i32, i32) {
    %c0_i32 = arith.constant 0 : i32
    %c0_i32_0 = arith.constant 0 : i32
    %c0_i32_1 = arith.constant 0 : i32
    return %c0_i32, %c0_i32_0 : i32, i32
  }
  func.func @transform_11(%arg0: i32) -> (i32, i32) {
    %c0_i32 = arith.constant 0 : i32
    %c0_i32_0 = arith.constant 0 : i32
    %c0_i32_1 = arith.constant 0 : i32
    return %c0_i32, %c0_i32_0 : i32, i32
  }
  func.func @transform_12(%arg0: i32) -> (i32, i32) {
    %c0_i32 = arith.constant 0 : i32
    %c0_i32_0 = arith.constant 0 : i32
    return %arg0, %c0_i32 : i32, i32
  }
}

</mosaic_0001>

<llo_original>
// kernel: pairwise_blstm_forward.1
$region0: #{pairwise_blstm_forward.1}
  #allocation0 [shape = 'u32[]', space=smem, size = 0x4, offset = 0x4, fixed_abs, tag = 'smem constant byte address 0x4 - core index']
  #allocation1 [shape = 'u32[144,128]{1,0:T(1,128)}', space=vmem, size = 0x12000, scoped, tag = 'internal scratch']
  %s0 = inlined_call_operand.hbm [shape: f32[16,256], index: 0, kind: input, shape index: {}]
  %s1 = inlined_call_operand.hbm [shape: f32[16,36], index: 1, kind: input, shape index: {}]
  %s2 = inlined_call_operand.vmem [shape: f32[16,64], index: 2, kind: input, shape index: {}]
  %s3 = inlined_call_operand.vmem [shape: f32[257,128], index: 3, kind: input, shape index: {}]
  %s4 = inlined_call_operand.vmem [shape: f32[169,128], index: 4, kind: input, shape index: {}]
  %s5 = inlined_call_operand.vmem [shape: f32[129,128], index: 5, kind: input, shape index: {}]
  %s6 = inlined_call_operand.vmem [shape: f32[129,64], index: 6, kind: input, shape index: {}]
  %s7 = inlined_call_operand.vmem [shape: f32[65,32], index: 7, kind: input, shape index: {}]
  %s8 = inlined_call_operand.vmem [shape: f32[33,32], index: 8, kind: input, shape index: {}]
  %s9 = inlined_call_operand.vmem [shape: f32[65,128], index: 9, kind: input, shape index: {}]
  %s10 = inlined_call_operand.vmem [shape: f32[33,32], index: 10, kind: input, shape index: {}]
  %s11 = inlined_call_operand.vmem [shape: f32[33,32], index: 11, kind: input, shape index: {}]
  %s12 = inlined_call_operand.vmem [shape: f32[16,128], index: 12, kind: output, shape index: {}]
  %s13 = sld [smem:[#allocation0]]
  $region89: #{pairwise_blstm_forward.1} parent=0
    _
  %s15 = ssub.s32 1, %s13
  %s16 = scalar_select 0, %s15, %s13
  $region1: #{pairwise_blstm_forward.1} parent=0
    #allocation2 [shape = 'u8[16384]{0}', space=vmem, size = 0x4000, scoped, tag = 'input window, operand 0']
    #allocation3 [shape = 's32[2]{0}', space=sflag, size = 0x8, scoped, tag = 'scoped memory for pairwise_blstm_forward.1']
    #allocation4 [shape = 'u8[8192]{0}', space=vmem, size = 0x2000, scoped, tag = 'input window, operand 1']
    #allocation5 [shape = 's32[2]{0}', space=sflag, size = 0x8, scoped, tag = 'scoped memory for pairwise_blstm_forward.1']
    %17 = vsyncpa [#allocation3], 0
    %s18 = scalar_lea.sflag [#allocation3], 1
    %19 = vsyncpa %s18, 0
    %20 = vsyncpa [#allocation5], 0
    %s21 = scalar_lea.sflag [#allocation5], 1
    %22 = vsyncpa %s21, 0
    loop: start=0, step=1, limit=4
    $region2: #{pairwise_blstm_forward.1} parent=1 // loop_pre_header
      _
    $region3: #{pairwise_blstm_forward.1} parent=1 // loop_header
      %s24 = sphi 0, %s28
      %p25 = scmp.ge.s32.totalorder %s24, 4
      %s34 = sphi 0, %s36
      %s37 = sphi 0, %s34
      %s38 = sphi 0, %s37
      %s54 = sphi 0, %s38
      %s60 = sphi 0, %s62
      %s63 = sphi 0, %s60
      %s64 = sphi 0, %s63
      %s80 = sphi 0, %s64
      %s86 = sphi 0, %s88
      %s89 = sphi 0, %s86
      %s90 = sphi 0, %s89
      %s106 = sphi 0, %s90
      %s110 = sphi 0, %s110
      %s112 = sphi 0, %s110
      %s113 = sphi 0, %s112
      %s127 = sphi 0, %s113
      %s131 = sphi 0, %s131
      %s133 = sphi 0, %s131
      %s134 = sphi 0, %s133
      %s148 = sphi 0, %s134
      %s152 = sphi 0, %s152
      %s154 = sphi 0, %s152
      %s155 = sphi 0, %s154
      %s169 = sphi 0, %s155
      %s173 = sphi 0, %s173
      %s175 = sphi 0, %s173
      %s176 = sphi 0, %s175
      %s190 = sphi 0, %s176
      %s194 = sphi 0, %s194
      %s196 = sphi 0, %s194
      %s197 = sphi 0, %s196
      %s211 = sphi 0, %s197
      %s215 = sphi 0, %s215
      %s217 = sphi 0, %s215
      %s218 = sphi 0, %s217
      %s232 = sphi 0, %s218
      %s236 = sphi 0, %s236
      %s238 = sphi 0, %s236
      %s239 = sphi 0, %s238
      %s253 = sphi 0, %s239
      %s257 = sphi 0, %s257
      %s259 = sphi 0, %s257
      %s260 = sphi 0, %s259
      %s274 = sphi 0, %s260
      %s278 = sphi 0, %s278
      %s280 = sphi 0, %s278
      %s281 = sphi 0, %s280
      %s295 = sphi 0, %s281
      %s301 = sphi 0, %s303
      %s304 = sphi 0, %s301
      %s305 = sphi 0, %s304
      %s321 = sphi 0, %s305
    $region4: #{pairwise_blstm_forward.1} parent=1 // loop_header_branch
      %27 = sbr.rel (%p25) target = $region8
    $region5: #{pairwise_blstm_forward.1} parent=1 // loop_body
      %s29 = ssub.s32 %s24, 1
      %s30 = ssub.s32 %s24, 2
      %s31 = sadd.s32 %s24, 1
      %s32 = ssub.s32 %s24, %s31
      %p33 = scmp.eq.s32.totalorder %s32, 0
      %s35 = sadd.s32 %s34, 1
      %s36 = scalar_select %p33, %s34, %s35
      %p39 = pneg %p33
      %p40 = scmp.eq.s32.totalorder %s24, 1
      %p41 = por %p39, %p40
      %p42 = scmp.ne.s32.totalorder %s34, %s37
      %p43 = scmp.eq.s32.totalorder %s24, 0
      %p44 = por %p42, %p43
      %p45 = scmp.ne.s32.totalorder %s34, %s37
      %p46 = scmp.eq.s32.totalorder %s29, 1
      %p47 = por %p45, %p46
      %p48 = scmp.ne.s32.totalorder %s37, %s38
      %p49 = scmp.eq.s32.totalorder %s29, 0
      %p50 = por %p48, %p49
      %p51 = scmp.ne.s32.totalorder %s37, %s38
      %p52 = scmp.eq.s32.totalorder %s30, 1
      %p53 = por %p51, %p52
      %p55 = scmp.ne.s32.totalorder %s38, %s54
      %p56 = scmp.eq.s32.totalorder %s30, 0
      %p57 = por %p55, %p56
      %s58 = ssub.s32 %s24, %s31
      %p59 = scmp.eq.s32.totalorder %s58, 0
      %s61 = sadd.s32 %s60, 1
      %s62 = scalar_select %p59, %s60, %s61
      %p65 = pneg %p59
      %p66 = scmp.eq.s32.totalorder %s24, 1
      %p67 = por %p65, %p66
      %p68 = scmp.ne.s32.totalorder %s60, %s63
      %p69 = scmp.eq.s32.totalorder %s24, 0
      %p70 = por %p68, %p69
      %p71 = scmp.ne.s32.totalorder %s60, %s63
      %p72 = scmp.eq.s32.totalorder %s29, 1
      %p73 = por %p71, %p72
      %p74 = scmp.ne.s32.totalorder %s63, %s64
      %p75 = scmp.eq.s32.totalorder %s29, 0
      %p76 = por %p74, %p75
      %p77 = scmp.ne.s32.totalorder %s63, %s64
      %p78 = scmp.eq.s32.totalorder %s30, 1
      %p79 = por %p77, %p78
      %p81 = scmp.ne.s32.totalorder %s64, %s80
      %p82 = scmp.eq.s32.totalorder %s30, 0
      %p83 = por %p81, %p82
      %s84 = ssub.s32 %s24, %s31
      %p85 = scmp.eq.s32.totalorder %s84, 0
      %s87 = sadd.s32 %s86, 1
      %s88 = scalar_select %p85, %s86, %s87
      %p91 = pneg %p85
      %p92 = scmp.eq.s32.totalorder %s24, 1
      %p93 = por %p91, %p92
      %p94 = scmp.ne.s32.totalorder %s86, %s89
      %p95 = scmp.eq.s32.totalorder %s24, 0
      %p96 = por %p94, %p95
      %p97 = scmp.ne.s32.totalorder %s86, %s89
      %p98 = scmp.eq.s32.totalorder %s29, 1
      %p99 = por %p97, %p98
      %p100 = scmp.ne.s32.totalorder %s89, %s90
      %p101 = scmp.eq.s32.totalorder %s29, 0
      %p102 = por %p100, %p101
      %p103 = scmp.ne.s32.totalorder %s89, %s90
      %p104 = scmp.eq.s32.totalorder %s30, 1
      %p105 = por %p103, %p104
      %p107 = scmp.ne.s32.totalorder %s90, %s106
      %p108 = scmp.eq.s32.totalorder %s30, 0
      %p109 = por %p107, %p108
      %s111 = sadd.s32 %s110, 1
      %p114 = scmp.eq.s32.totalorder %s24, 1
      %p115 = scmp.ne.s32.totalorder %s110, %s112
      %p116 = scmp.eq.s32.totalorder %s24, 0
      %p117 = por %p115, %p116
      %p118 = scmp.ne.s32.totalorder %s110, %s112
      %p119 = scmp.eq.s32.totalorder %s29, 1
      %p120 = por %p118, %p119
      %p121 = scmp.ne.s32.totalorder %s112, %s113
      %p122 = scmp.eq.s32.totalorder %s29, 0
      %p123 = por %p121, %p122
      %p124 = scmp.ne.s32.totalorder %s112, %s113
      %p125 = scmp.eq.s32.totalorder %s30, 1
      %p126 = por %p124, %p125
      %p128 = scmp.ne.s32.totalorder %s113, %s127
      %p129 = scmp.eq.s32.totalorder %s30, 0
      %p130 = por %p128, %p129
      %s132 = sadd.s32 %s131, 1
      %p135 = scmp.eq.s32.totalorder %s24, 1
      %p136 = scmp.ne.s32.totalorder %s131, %s133
      %p137 = scmp.eq.s32.totalorder %s24, 0
      %p138 = por %p136, %p137
      %p139 = scmp.ne.s32.totalorder %s131, %s133
      %p140 = scmp.eq.s32.totalorder %s29, 1
      %p141 = por %p139, %p140
      %p142 = scmp.ne.s32.totalorder %s133, %s134
      %p143 = scmp.eq.s32.totalorder %s29, 0
      %p144 = por %p142, %p143
      %p145 = scmp.ne.s32.totalorder %s133, %s134
      %p146 = scmp.eq.s32.totalorder %s30, 1
      %p147 = por %p145, %p146
      %p149 = scmp.ne.s32.totalorder %s134, %s148
      %p150 = scmp.eq.s32.totalorder %s30, 0
      %p151 = por %p149, %p150
      %s153 = sadd.s32 %s152, 1
      %p156 = scmp.eq.s32.totalorder %s24, 1
      %p157 = scmp.ne.s32.totalorder %s152, %s154
      %p158 = scmp.eq.s32.totalorder %s24, 0
      %p159 = por %p157, %p158
      %p160 = scmp.ne.s32.totalorder %s152, %s154
      %p161 = scmp.eq.s32.totalorder %s29, 1
      %p162 = por %p160, %p161
      %p163 = scmp.ne.s32.totalorder %s154, %s155
      %p164 = scmp.eq.s32.totalorder %s29, 0
      %p165 = por %p163, %p164
      %p166 = scmp.ne.s32.totalorder %s154, %s155
      %p167 = scmp.eq.s32.totalorder %s30, 1
      %p168 = por %p166, %p167
      %p170 = scmp.ne.s32.totalorder %s155, %s169
      %p171 = scmp.eq.s32.totalorder %s30, 0
      %p172 = por %p170, %p171
      %s174 = sadd.s32 %s173, 1
      %p177 = scmp.eq.s32.totalorder %s24, 1
      %p178 = scmp.ne.s32.totalorder %s173, %s175
      %p179 = scmp.eq.s32.totalorder %s24, 0
      %p180 = por %p178, %p179
      %p181 = scmp.ne.s32.totalorder %s173, %s175
      %p182 = scmp.eq.s32.totalorder %s29, 1
      %p183 = por %p181, %p182
      %p184 = scmp.ne.s32.totalorder %s175, %s176
      %p185 = scmp.eq.s32.totalorder %s29, 0
      %p186 = por %p184, %p185
      %p187 = scmp.ne.s32.totalorder %s175, %s176
      %p188 = scmp.eq.s32.totalorder %s30, 1
      %p189 = por %p187, %p188
      %p191 = scmp.ne.s32.totalorder %s176, %s190
      %p192 = scmp.eq.s32.totalorder %s30, 0
      %p193 = por %p191, %p192
      %s195 = sadd.s32 %s194, 1
      %p198 = scmp.eq.s32.totalorder %s24, 1
      %p199 = scmp.ne.s32.totalorder %s194, %s196
      %p200 = scmp.eq.s32.totalorder %s24, 0
      %p201 = por %p199, %p200
      %p202 = scmp.ne.s32.totalorder %s194, %s196
      %p203 = scmp.eq.s32.totalorder %s29, 1
      %p204 = por %p202, %p203
      %p205 = scmp.ne.s32.totalorder %s196, %s197
      %p206 = scmp.eq.s32.totalorder %s29, 0
      %p207 = por %p205, %p206
      %p208 = scmp.ne.s32.totalorder %s196, %s197
      %p209 = scmp.eq.s32.totalorder %s30, 1
      %p210 = por %p208, %p209
      %p212 = scmp.ne.s32.totalorder %s197, %s211
      %p213 = scmp.eq.s32.totalorder %s30, 0
      %p214 = por %p212, %p213
      %s216 = sadd.s32 %s215, 1
      %p219 = scmp.eq.s32.totalorder %s24, 1
      %p220 = scmp.ne.s32.totalorder %s215, %s217
      %p221 = scmp.eq.s32.totalorder %s24, 0
      %p222 = por %p220, %p221
      %p223 = scmp.ne.s32.totalorder %s215, %s217
      %p224 = scmp.eq.s32.totalorder %s29, 1
      %p225 = por %p223, %p224
      %p226 = scmp.ne.s32.totalorder %s217, %s218
      %p227 = scmp.eq.s32.totalorder %s29, 0
      %p228 = por %p226, %p227
      %p229 = scmp.ne.s32.totalorder %s217, %s218
      %p230 = scmp.eq.s32.totalorder %s30, 1
      %p231 = por %p229, %p230
      %p233 = scmp.ne.s32.totalorder %s218, %s232
      %p234 = scmp.eq.s32.totalorder %s30, 0
      %p235 = por %p233, %p234
      %s237 = sadd.s32 %s236, 1
      %p240 = scmp.eq.s32.totalorder %s24, 1
      %p241 = scmp.ne.s32.totalorder %s236, %s238
      %p242 = scmp.eq.s32.totalorder %s24, 0
      %p243 = por %p241, %p242
      %p244 = scmp.ne.s32.totalorder %s236, %s238
      %p245 = scmp.eq.s32.totalorder %s29, 1
      %p246 = por %p244, %p245
      %p247 = scmp.ne.s32.totalorder %s238, %s239
      %p248 = scmp.eq.s32.totalorder %s29, 0
      %p249 = por %p247, %p248
      %p250 = scmp.ne.s32.totalorder %s238, %s239
      %p251 = scmp.eq.s32.totalorder %s30, 1
      %p252 = por %p250, %p251
      %p254 = scmp.ne.s32.totalorder %s239, %s253
      %p255 = scmp.eq.s32.totalorder %s30, 0
      %p256 = por %p254, %p255
      %s258 = sadd.s32 %s257, 1
      %p261 = scmp.eq.s32.totalorder %s24, 1
      %p262 = scmp.ne.s32.totalorder %s257, %s259
      %p263 = scmp.eq.s32.totalorder %s24, 0
      %p264 = por %p262, %p263
      %p265 = scmp.ne.s32.totalorder %s257, %s259
      %p266 = scmp.eq.s32.totalorder %s29, 1
      %p267 = por %p265, %p266
      %p268 = scmp.ne.s32.totalorder %s259, %s260
      %p269 = scmp.eq.s32.totalorder %s29, 0
      %p270 = por %p268, %p269
      %p271 = scmp.ne.s32.totalorder %s259, %s260
      %p272 = scmp.eq.s32.totalorder %s30, 1
      %p273 = por %p271, %p272
      %p275 = scmp.ne.s32.totalorder %s260, %s274
      %p276 = scmp.eq.s32.totalorder %s30, 0
      %p277 = por %p275, %p276
      %s279 = sadd.s32 %s278, 1
      %p282 = scmp.eq.s32.totalorder %s24, 1
      %p283 = scmp.ne.s32.totalorder %s278, %s280
      %p284 = scmp.eq.s32.totalorder %s24, 0
      %p285 = por %p283, %p284
      %p286 = scmp.ne.s32.totalorder %s278, %s280
      %p287 = scmp.eq.s32.totalorder %s29, 1
      %p288 = por %p286, %p287
      %p289 = scmp.ne.s32.totalorder %s280, %s281
      %p290 = scmp.eq.s32.totalorder %s29, 0
      %p291 = por %p289, %p290
      %p292 = scmp.ne.s32.totalorder %s280, %s281
      %p293 = scmp.eq.s32.totalorder %s30, 1
      %p294 = por %p292, %p293
      %p296 = scmp.ne.s32.totalorder %s281, %s295
      %p297 = scmp.eq.s32.totalorder %s30, 0
      %p298 = por %p296, %p297
      %s299 = ssub.s32 %s24, %s31
      %p300 = scmp.eq.s32.totalorder %s299, 0
      %s302 = sadd.s32 %s301, 1
      %s303 = scalar_select %p300, %s301, %s302
      %p306 = pneg %p300
      %p307 = scmp.eq.s32.totalorder %s24, 1
      %p308 = por %p306, %p307
      %p309 = scmp.ne.s32.totalorder %s301, %s304
      %p310 = scmp.eq.s32.totalorder %s24, 0
      %p311 = por %p309, %p310
      %p312 = scmp.ne.s32.totalorder %s301, %s304
      %p313 = scmp.eq.s32.totalorder %s29, 1
      %p314 = por %p312, %p313
      %p315 = scmp.ne.s32.totalorder %s304, %s305
      %p316 = scmp.eq.s32.totalorder %s29, 0
      %p317 = por %p315, %p316
      %p318 = scmp.ne.s32.totalorder %s304, %s305
      %p319 = scmp.eq.s32.totalorder %s30, 1
      %p320 = por %p318, %p319
      %p322 = scmp.ne.s32.totalorder %s305, %s321
      %p323 = scmp.eq.s32.totalorder %s30, 0
      %p324 = por %p322, %p323
      %p325 = scmp.le.s32.totalorder 1, %s24
      %p326 = scmp.lt.s32.totalorder %s24, 3
      %p327 = pnand %p325, %p326
      %p328 = pneg %p327
      // Predicated region
      $region9: #{pairwise_blstm_forward.1} parent=5 // pred_check
        _
      $region10: #{pairwise_blstm_forward.1} parent=5 // pred_check_branch
        %330 = sbr.rel (%p327) target = $region12
      $region11: #{pairwise_blstm_forward.1} parent=5 // pred_region
        %s331 = ssub.s32 %s24, 1
        // Predicated region
        $region13: #{pairwise_blstm_forward.1} parent=11 // pred_check
          %p332 = pneg %p123
        $region14: #{pairwise_blstm_forward.1} parent=11 // pred_check_branch
          %334 = sbr.rel (%p332) target = $region16
        $region15: #{pairwise_blstm_forward.1} parent=11 // pred_region
          _
        $region16: #{pairwise_blstm_forward.1} parent=11 // pred_fallthru
          _
        // Predicated region
        $region17: #{pairwise_blstm_forward.1} parent=11 // pred_check
          %p335 = pneg %p144
        $region18: #{pairwise_blstm_forward.1} parent=11 // pred_check_branch
          %337 = sbr.rel (%p335) target = $region20
        $region19: #{pairwise_blstm_forward.1} parent=11 // pred_region
          _
        $region20: #{pairwise_blstm_forward.1} parent=11 // pred_fallthru
          _
        // Predicated region
        $region21: #{pairwise_blstm_forward.1} parent=11 // pred_check
          %p338 = pneg %p165
        $region22: #{pairwise_blstm_forward.1} parent=11 // pred_check_branch
          %340 = sbr.rel (%p338) target = $region24
        $region23: #{pairwise_blstm_forward.1} parent=11 // pred_region
          _
        $region24: #{pairwise_blstm_forward.1} parent=11 // pred_fallthru
          _
        // Predicated region
        $region25: #{pairwise_blstm_forward.1} parent=11 // pred_check
          %p341 = pneg %p186
        $region26: #{pairwise_blstm_forward.1} parent=11 // pred_check_branch
          %343 = sbr.rel (%p341) target = $region28
        $region27: #{pairwise_blstm_forward.1} parent=11 // pred_region
          _
        $region28: #{pairwise_blstm_forward.1} parent=11 // pred_fallthru
          _
        // Predicated region
        $region29: #{pairwise_blstm_forward.1} parent=11 // pred_check
          %p344 = pneg %p207
        $region30: #{pairwise_blstm_forward.1} parent=11 // pred_check_branch
          %346 = sbr.rel (%p344) target = $region32
        $region31: #{pairwise_blstm_forward.1} parent=11 // pred_region
          _
        $region32: #{pairwise_blstm_forward.1} parent=11 // pred_fallthru
          _
        // Predicated region
        $region33: #{pairwise_blstm_forward.1} parent=11 // pred_check
          %p347 = pneg %p228
        $region34: #{pairwise_blstm_forward.1} parent=11 // pred_check_branch
          %349 = sbr.rel (%p347) target = $region36
        $region35: #{pairwise_blstm_forward.1} parent=11 // pred_region
          _
        $region36: #{pairwise_blstm_forward.1} parent=11 // pred_fallthru
          _
        // Predicated region
        $region37: #{pairwise_blstm_forward.1} parent=11 // pred_check
          %p350 = pneg %p249
        $region38: #{pairwise_blstm_forward.1} parent=11 // pred_check_branch
          %352 = sbr.rel (%p350) target = $region40
        $region39: #{pairwise_blstm_forward.1} parent=11 // pred_region
          _
        $region40: #{pairwise_blstm_forward.1} parent=11 // pred_fallthru
          _
        // Predicated region
        $region41: #{pairwise_blstm_forward.1} parent=11 // pred_check
          %p353 = pneg %p270
        $region42: #{pairwise_blstm_forward.1} parent=11 // pred_check_branch
          %355 = sbr.rel (%p353) target = $region44
        $region43: #{pairwise_blstm_forward.1} parent=11 // pred_region
          _
        $region44: #{pairwise_blstm_forward.1} parent=11 // pred_fallthru
          _
        // Predicated region
        $region45: #{pairwise_blstm_forward.1} parent=11 // pred_check
          %p356 = pneg %p291
        $region46: #{pairwise_blstm_forward.1} parent=11 // pred_check_branch
          %358 = sbr.rel (%p356) target = $region48
        $region47: #{pairwise_blstm_forward.1} parent=11 // pred_region
          _
        $region48: #{pairwise_blstm_forward.1} parent=11 // pred_fallthru
          _
      $region12: #{pairwise_blstm_forward.1} parent=5 // pred_fallthru
        _
      %p359 = scmp.lt.s32.totalorder %s24, 2
      // Predicated region
      $region49: #{pairwise_blstm_forward.1} parent=5 // pred_check
        %p360 = pneg %p359
      $region50: #{pairwise_blstm_forward.1} parent=5 // pred_check_branch
        %362 = sbr.rel (%p360) target = $region52
      $region51: #{pairwise_blstm_forward.1} parent=5 // pred_region
        // Predicated region
        $region53: #{pairwise_blstm_forward.1} parent=51 // pred_check
          %p363 = pneg %p44
        $region54: #{pairwise_blstm_forward.1} parent=51 // pred_check_branch
          %365 = sbr.rel (%p363) target = $region56
        $region55: #{pairwise_blstm_forward.1} parent=51 // pred_region
          %s366 = sand.u32 %s34, 1
          %s367 = scalar_lea.sflag [#allocation3], %s366
          %s368 = sand.u32 %s34, 1
          %s369 = smul.addr %s368, 16
          %s370 = scalar_lea.vmem [#allocation2], %s369
          %s372 = ssub.s32 256, 256
          %373 = vsyncadd %s367, %s372
          %s374 = smul.addr %s24, 2
          %s375 = smul.addr %s374, 128
          %s376 = scalar_lea.hbm %s0, %s375
          %s378 = sshll.u32 %s370, 4
          %s379 = int_to_ptr.vmem [resolvable:$true] %s378
          %381 = dma.hbm_to_vmem [thread:$0]  %s376, 256, %s379, %s367
        $region56: #{pairwise_blstm_forward.1} parent=51 // pred_fallthru
          _
        // Predicated region
        $region57: #{pairwise_blstm_forward.1} parent=51 // pred_check
          %p382 = pneg %p70
        $region58: #{pairwise_blstm_forward.1} parent=51 // pred_check_branch
          %384 = sbr.rel (%p382) target = $region60
        $region59: #{pairwise_blstm_forward.1} parent=51 // pred_region
          %s385 = sand.u32 %s60, 1
          %s386 = scalar_lea.sflag [#allocation5], %s385
          %s387 = sand.u32 %s60, 1
          %s388 = smul.addr %s387, 8
          %s389 = scalar_lea.vmem [#allocation4], %s388
          %s391 = ssub.s32 128, 128
          %392 = vsyncadd %s386, %s391
          %s393 = smul.addr %s24, 128
          %s394 = scalar_lea.hbm %s1, %s393
          %s396 = sshll.u32 %s389, 4
          %s397 = int_to_ptr.vmem [resolvable:$true] %s396
          %399 = dma.hbm_to_vmem [thread:$0]  %s394, 128, %s397, %s386
        $region60: #{pairwise_blstm_forward.1} parent=51 // pred_fallthru
          _
        // Predicated region
        $region61: #{pairwise_blstm_forward.1} parent=51 // pred_check
          %p400 = pneg %p96
        $region62: #{pairwise_blstm_forward.1} parent=51 // pred_check_branch
          %402 = sbr.rel (%p400) target = $region64
        $region63: #{pairwise_blstm_forward.1} parent=51 // pred_region
          %p403 = scmp.lt.s32.totalorder %s24, 1
          %s404 = scalar_select %p403, %s24, 1
          %s405 = smul.addr %s404, 8
          %s406 = scalar_lea.vmem %s2, %s405
        $region64: #{pairwise_blstm_forward.1} parent=51 // pred_fallthru
          _
      $region52: #{pairwise_blstm_forward.1} parent=5 // pred_fallthru
        _
      %p407 = scmp.le.s32.totalorder 1, %s24
      %p408 = scmp.lt.s32.totalorder %s24, 3
      %p409 = pnand %p407, %p408
      %p410 = pneg %p409
      // Predicated region
      $region65: #{pairwise_blstm_forward.1} parent=5 // pred_check
        _
      $region66: #{pairwise_blstm_forward.1} parent=5 // pred_check_branch
        %412 = sbr.rel (%p409) target = $region68
      $region67: #{pairwise_blstm_forward.1} parent=5 // pred_region
        %s413 = ssub.s32 %s24, 1
        %s414 = sand.u32 %s37, 1
        %s415 = scalar_lea.sflag [#allocation3], %s414
        %s416 = sand.u32 %s37, 1
        %s417 = smul.addr %s416, 16
        %s418 = scalar_lea.vmem [#allocation2], %s417
        // Predicated region
        $region69: #{pairwise_blstm_forward.1} parent=67 // pred_check
          %p419 = pneg %p50
        $region70: #{pairwise_blstm_forward.1} parent=67 // pred_check_branch
          %421 = sbr.rel (%p419) target = $region72
        $region71: #{pairwise_blstm_forward.1} parent=67 // pred_region
          %422 = dma.done %s415, 256
        $region72: #{pairwise_blstm_forward.1} parent=67 // pred_fallthru
          _
        %s423 = sand.u32 %s63, 1
        %s424 = scalar_lea.sflag [#allocation5], %s423
        %s425 = sand.u32 %s63, 1
        %s426 = smul.addr %s425, 8
        %s427 = scalar_lea.vmem [#allocation4], %s426
        // Predicated region
        $region73: #{pairwise_blstm_forward.1} parent=67 // pred_check
          %p428 = pneg %p76
        $region74: #{pairwise_blstm_forward.1} parent=67 // pred_check_branch
          %430 = sbr.rel (%p428) target = $region76
        $region75: #{pairwise_blstm_forward.1} parent=67 // pred_region
          %431 = dma.done %s424, 128
        $region76: #{pairwise_blstm_forward.1} parent=67 // pred_fallthru
          _
        %s432 = sand.u32 %s37, 1
        %s433 = scalar_lea.sflag [#allocation3], %s432
        %s434 = sand.u32 %s37, 1
        %s435 = smul.addr %s434, 16
        %s436 = scalar_lea.vmem [#allocation2], %s435
        %p437 = pneg %p50
        %p438 = pneg %p47
        %s439 = sand.u32 %s63, 1
        %s440 = scalar_lea.sflag [#allocation5], %s439
        %s441 = sand.u32 %s63, 1
        %s442 = smul.addr %s441, 8
        %s443 = scalar_lea.vmem [#allocation4], %s442
        %p444 = pneg %p76
        %p445 = pneg %p73
        %p446 = scmp.lt.s32.totalorder %s29, 1
        %s447 = scalar_select %p446, %s29, 1
        %s448 = smul.addr %s447, 8
        %s449 = scalar_lea.vmem %s2, %s448
        %p450 = pneg %p102
        %p451 = pneg %p99
        %p452 = pneg %p123
        %p453 = pneg %p120
        %p454 = pneg %p144
        %p455 = pneg %p141
        %p456 = pneg %p165
        %p457 = pneg %p162
        %p458 = pneg %p186
        %p459 = pneg %p183
        %p460 = pneg %p207
        %p461 = pneg %p204
        %p462 = pneg %p228
        %p463 = pneg %p225
        %p464 = pneg %p249
        %p465 = pneg %p246
        %p466 = pneg %p270
        %p467 = pneg %p267
        %p468 = pneg %p291
        %p469 = pneg %p288
        %p470 = pneg %p317
        %p471 = pneg %p314
        %p472 = scmp.lt.s32.totalorder %s29, 1
        %s473 = scalar_select %p472, %s29, 1
        %s474 = smul.addr %s473, 8
        %s475 = scalar_lea.vmem %s12, %s474
        %p476 = scmp.lt.s32.totalorder %s29, 1
        %s477 = scalar_select %p476, %s29, 1
        %s478 = smul.addr %s477, 8
        %s479 = scalar_lea.vmem %s2, %s478
        %p480 = scmp.lt.s32.totalorder %s29, 1
        %s481 = scalar_select %p480, %s29, 1
        %s482 = smul.addr %s481, 8
        %s483 = scalar_lea.vmem %s12, %s482
        %v484 = vld [vmem:[%s418] sm:$0xff]
        %v485 = vld [vmem:[%s418 + $0x8] sm:$0xff]
        %v486 = vld [vmem:[%s427] sm:$0xff]
        %v487 = vld [vmem:[%s479] sm:$0xff]
        %v488 = vld [vmem:[%s3] sm:$0xff]
        %v489 = vld [vmem:[%s3 + $0x8] sm:$0xff]
        %v490 = vld [vmem:[%s3 + $0x10] sm:$0xff]
        %v491 = vld [vmem:[%s3 + $0x18] sm:$0xff]
        %v492 = vld [vmem:[%s3 + $0x20] sm:$0xff]
        %v493 = vld [vmem:[%s3 + $0x28] sm:$0xff]
        %v494 = vld [vmem:[%s3 + $0x30] sm:$0xff]
        %v495 = vld [vmem:[%s3 + $0x38] sm:$0xff]
        %v496 = vld [vmem:[%s3 + $0x40] sm:$0xff]
        %v497 = vld [vmem:[%s3 + $0x48] sm:$0xff]
        %v498 = vld [vmem:[%s3 + $0x50] sm:$0xff]
        %v499 = vld [vmem:[%s3 + $0x58] sm:$0xff]
        %v500 = vld [vmem:[%s3 + $0x60] sm:$0xff]
        %v501 = vld [vmem:[%s3 + $0x68] sm:$0xff]
        %v502 = vld [vmem:[%s3 + $0x70] sm:$0xff]
        %v503 = vld [vmem:[%s3 + $0x78] sm:$0xff]
        %v504 = vld [vmem:[%s3 + $0x80] sm:$0xff]
        %v505 = vld [vmem:[%s3 + $0x88] sm:$0xff]
        %v506 = vld [vmem:[%s3 + $0x90] sm:$0xff]
        %v507 = vld [vmem:[%s3 + $0x98] sm:$0xff]
        %v508 = vld [vmem:[%s3 + $0xa0] sm:$0xff]
        %v509 = vld [vmem:[%s3 + $0xa8] sm:$0xff]
        %v510 = vld [vmem:[%s3 + $0xb0] sm:$0xff]
        %v511 = vld [vmem:[%s3 + $0xb8] sm:$0xff]
        %v512 = vld [vmem:[%s3 + $0xc0] sm:$0xff]
        %v513 = vld [vmem:[%s3 + $0xc8] sm:$0xff]
        %v514 = vld [vmem:[%s3 + $0xd0] sm:$0xff]
        %v515 = vld [vmem:[%s3 + $0xd8] sm:$0xff]
        %v516 = vld [vmem:[%s3 + $0xe0] sm:$0xff]
        %v517 = vld [vmem:[%s3 + $0xe8] sm:$0xff]
        %v518 = vld [vmem:[%s3 + $0xf0] sm:$0xff]
        %v519 = vld [vmem:[%s3 + $0xf8] sm:$0xff]
        %v520 = vld [vmem:[%s3 + $0x100] sm:$0x1]
        %v521 = vlaneseq
        %v522 = vshrl.u32 %v521, 7
        %v523 = vsub.s32 0, %v522
        %v524 = vrot.slane %v520, %v523
        %525 = vmatprep.subr.mxu0 0.0
        %526 = vmatpush1.msra.mxu0 %v488
        %527 = vmatprep.subr.mxu0 0.0
        %528 = vmatpush1.msra.mxu0 %v489
        %529 = vmatprep.subr.mxu0 0.0
        %530 = vmatpush1.msra.mxu0 %v490
        %531 = vmatprep.subr.mxu0 0.0
        %532 = vmatpush1.msra.mxu0 %v491
        %533 = vmatprep.subr.mxu0 0.0
        %534 = vmatpush1.msra.mxu0 %v492
        %535 = vmatprep.subr.mxu0 0.0
        %536 = vmatpush1.msra.mxu0 %v493
        %537 = vmatprep.subr.mxu0 0.0
        %538 = vmatpush1.msra.mxu0 %v494
        %539 = vmatprep.subr.mxu0 0.0
        %540 = vmatpush1.msra.mxu0 %v495
        %541 = vmatprep.subr.mxu0 0.0
        %542 = vmatpush1.msra.mxu0 %v496
        %543 = vmatprep.subr.mxu0 0.0
        %544 = vmatpush1.msra.mxu0 %v497
        %545 = vmatprep.subr.mxu0 0.0
        %546 = vmatpush1.msra.mxu0 %v498
        %547 = vmatprep.subr.mxu0 0.0
        %548 = vmatpush1.msra.mxu0 %v499
        %549 = vmatprep.subr.mxu0 0.0
        %550 = vmatpush1.msra.mxu0 %v500
        %551 = vmatprep.subr.mxu0 0.0
        %552 = vmatpush1.msra.mxu0 %v501
        %553 = vmatprep.subr.mxu0 0.0
        %554 = vmatpush1.msra.mxu0 %v502
        %555 = vmatprep.subr.mxu0 0.0
        %556 = vmatpush1.msra.mxu0 %v503
        %557 = vmatprep.subr.mxu0 0.0
        %558 = vmatpush1.msra.mxu0 %v504
        %559 = vmatprep.subr.mxu0 0.0
        %560 = vmatpush1.msra.mxu0 %v505
        %561 = vmatprep.subr.mxu0 0.0
        %562 = vmatpush1.msra.mxu0 %v506
        %563 = vmatprep.subr.mxu0 0.0
        %564 = vmatpush1.msra.mxu0 %v507
        %565 = vmatprep.subr.mxu0 0.0
        %566 = vmatpush1.msra.mxu0 %v508
        %567 = vmatprep.subr.mxu0 0.0
        %568 = vmatpush1.msra.mxu0 %v509
        %569 = vmatprep.subr.mxu0 0.0
        %570 = vmatpush1.msra.mxu0 %v510
        %571 = vmatprep.subr.mxu0 0.0
        %572 = vmatpush1.msra.mxu0 %v511
        %573 = vmatprep.subr.mxu0 0.0
        %574 = vmatpush1.msra.mxu0 %v512
        %575 = vmatprep.subr.mxu0 0.0
        %576 = vmatpush1.msra.mxu0 %v513
        %577 = vmatprep.subr.mxu0 0.0
        %578 = vmatpush1.msra.mxu0 %v514
        %579 = vmatprep.subr.mxu0 0.0
        %580 = vmatpush1.msra.mxu0 %v515
        %581 = vmatprep.subr.mxu0 0.0
        %582 = vmatpush1.msra.mxu0 %v516
        %583 = vmatprep.subr.mxu0 0.0
        %584 = vmatpush1.msra.mxu0 %v517
        %585 = vmatprep.subr.mxu0 0.0
        %586 = vmatpush1.msra.mxu0 %v518
        %587 = vmatprep.subr.mxu0 0.0
        %588 = vmatpush1.msra.mxu0 %v519
        %589 = vmatprep.mubr.f32.mxu0 %v485
        %590 = vmatmul.mubr.f32.gmra.mrb[0].mxu0 %v484
        %v591 = vpop.f32.mrb[0].mxu0
        %v592 = vadd.f32 %v524, %v591
        %v593 = vpop.f32.mrb[0].mxu0
        %594 = vdwg.mxu0
        %v595 = vmax.f32 %v592, 0.0
        %v596 = vld [vmem:[%s4] sm:$0xff]
        %v597 = vld [vmem:[%s4 + $0x8] sm:$0xff]
        %v598 = vld [vmem:[%s4 + $0x10] sm:$0xff]
        %v599 = vld [vmem:[%s4 + $0x18] sm:$0xff]
        %v600 = vld [vmem:[%s4 + $0x20] sm:$0xff]
        %v601 = vld [vmem:[%s4 + $0x28] sm:$0xff]
        %v602 = vld [vmem:[%s4 + $0x30] sm:$0xff]
        %v603 = vld [vmem:[%s4 + $0x38] sm:$0xff]
        %v604 = vld [vmem:[%s4 + $0x40] sm:$0xff]
        %v605 = vld [vmem:[%s4 + $0x48] sm:$0xff]
        %v606 = vld [vmem:[%s4 + $0x50] sm:$0xff]
        %v607 = vld [vmem:[%s4 + $0x58] sm:$0xff]
        %v608 = vld [vmem:[%s4 + $0x60] sm:$0xff]
        %v609 = vld [vmem:[%s4 + $0x68] sm:$0xff]
        %v610 = vld [vmem:[%s4 + $0x70] sm:$0xff]
        %v611 = vld [vmem:[%s4 + $0x78] sm:$0xff]
        %v612 = vld [vmem:[%s4 + $0x80] sm:$0xff]
        %v613 = vld [vmem:[%s4 + $0x88] sm:$0xff]
        %v614 = vld [vmem:[%s4 + $0x90] sm:$0xff]
        %v615 = vld [vmem:[%s4 + $0x98] sm:$0xff]
        %v616 = vld [vmem:[%s4 + $0xa0] sm:$0xf]
        %vm617 = vcmask 293888
        %v619 = vsel %vm617, %v486, 0
        %vm621 = vcmask 1043456
        %v623 = vsel %vm621, %v616, 0
        %625 = vmatprep.subr.mxu0 0.0
        %626 = vmatpush1.msra.mxu0 %v612
        %627 = vmatprep.subr.mxu0 0.0
        %628 = vmatpush1.msra.mxu0 %v613
        %629 = vmatprep.subr.mxu0 0.0
        %630 = vmatpush1.msra.mxu0 %v614
        %631 = vmatprep.subr.mxu0 0.0
        %632 = vmatpush1.msra.mxu0 %v615
        %633 = vmatprep.subr.mxu0 0.0
        %634 = vmatpush1.msra.mxu0 %v623
        %635 = vmatprep.subr.mxu0 0.0
        %636 = vmatpush1.msra.mxu0 0.0
        %637 = vmatprep.subr.mxu0 0.0
        %638 = vmatpush1.msra.mxu0 0.0
        %639 = vmatprep.subr.mxu0 0.0
        %640 = vmatpush1.msra.mxu0 0.0
        %641 = vmatprep.subr.mxu0 0.0
        %642 = vmatpush1.msra.mxu0 0.0
        %643 = vmatprep.subr.mxu0 0.0
        %644 = vmatpush1.msra.mxu0 0.0
        %645 = vmatprep.subr.mxu0 0.0
        %646 = vmatpush1.msra.mxu0 0.0
        %647 = vmatprep.subr.mxu0 0.0
        %648 = vmatpush1.msra.mxu0 0.0
        %649 = vmatprep.subr.mxu0 0.0
        %650 = vmatpush1.msra.mxu0 0.0
        %651 = vmatprep.subr.mxu0 0.0
        %652 = vmatpush1.msra.mxu0 0.0
        %653 = vmatprep.subr.mxu0 0.0
        %654 = vmatpush1.msra.mxu0 0.0
        %655 = vmatprep.subr.mxu0 0.0
        %656 = vmatpush1.msra.mxu0 0.0
        %657 = vmatprep.subr.mxu0 0.0
        %658 = vmatpush1.msra.mxu0 0.0
        %659 = vmatprep.subr.mxu0 0.0
        %660 = vmatpush1.msra.mxu0 0.0
        %661 = vmatprep.subr.mxu0 0.0
        %662 = vmatpush1.msra.mxu0 0.0
        %663 = vmatprep.subr.mxu0 0.0
        %664 = vmatpush1.msra.mxu0 0.0
        %665 = vmatprep.subr.mxu0 0.0
        %666 = vmatpush1.msra.mxu0 0.0
        %667 = vmatprep.subr.mxu0 0.0
        %668 = vmatpush1.msra.mxu0 0.0
        %669 = vmatprep.subr.mxu0 0.0
        %670 = vmatpush1.msra.mxu0 0.0
        %671 = vmatprep.subr.mxu0 0.0
        %672 = vmatpush1.msra.mxu0 0.0
        %673 = vmatprep.subr.mxu0 0.0
        %674 = vmatpush1.msra.mxu0 0.0
        %675 = vmatprep.subr.mxu0 0.0
        %676 = vmatpush1.msra.mxu0 0.0
        %677 = vmatprep.subr.mxu0 0.0
        %678 = vmatpush1.msra.mxu0 0.0
        %679 = vmatprep.subr.mxu0 0.0
        %680 = vmatpush1.msra.mxu0 0.0
        %681 = vmatprep.subr.mxu0 0.0
        %682 = vmatpush1.msra.mxu0 0.0
        %683 = vmatprep.subr.mxu0 0.0
        %684 = vmatpush1.msra.mxu0 0.0
        %685 = vmatprep.subr.mxu0 0.0
        %686 = vmatpush1.msra.mxu0 0.0
        %687 = vmatprep.subr.mxu0 0.0
        %688 = vmatpush1.msra.mxu0 0.0
        %689 = vmatprep.mubr.f32.mxu0 0.0
        %690 = vmatmul.mubr.f32.gmra.mrb[0].mxu0 %v619
        %v691 = vpop.f32.mrb[0].mxu0
        %v692 = vadd.f32 0.0, %v691
        %v693 = vpop.f32.mrb[0].mxu0
        %694 = vdwg.mxu0
        %695 = vmatprep.subr.mxu0 0.0
        %696 = vmatpush1.msra.mxu0 %v596
        %697 = vmatprep.subr.mxu0 0.0
        %698 = vmatpush1.msra.mxu0 %v597
        %699 = vmatprep.subr.mxu0 0.0
        %700 = vmatpush1.msra.mxu0 %v598
        %701 = vmatprep.subr.mxu0 0.0
        %702 = vmatpush1.msra.mxu0 %v599
        %703 = vmatprep.subr.mxu0 0.0
        %704 = vmatpush1.msra.mxu0 %v600
        %705 = vmatprep.subr.mxu0 0.0
        %706 = vmatpush1.msra.mxu0 %v601
        %707 = vmatprep.subr.mxu0 0.0
        %708 = vmatpush1.msra.mxu0 %v602
        %709 = vmatprep.subr.mxu0 0.0
        %710 = vmatpush1.msra.mxu0 %v603
        %711 = vmatprep.subr.mxu0 0.0
        %712 = vmatpush1.msra.mxu0 %v604
        %713 = vmatprep.subr.mxu0 0.0
        %714 = vmatpush1.msra.mxu0 %v605
        %715 = vmatprep.subr.mxu0 0.0
        %716 = vmatpush1.msra.mxu0 %v606
        %717 = vmatprep.subr.mxu0 0.0
        %718 = vmatpush1.msra.mxu0 %v607
        %719 = vmatprep.subr.mxu0 0.0
        %720 = vmatpush1.msra.mxu0 %v608
        %721 = vmatprep.subr.mxu0 0.0
        %722 = vmatpush1.msra.mxu0 %v609
        %723 = vmatprep.subr.mxu0 0.0
        %724 = vmatpush1.msra.mxu0 %v610
        %725 = vmatprep.subr.mxu0 0.0
        %726 = vmatpush1.msra.mxu0 %v611
        %727 = vmatprep.subr.mxu0 0.0
        %728 = vmatpush1.msra.mxu0 0.0
        %729 = vmatprep.subr.mxu0 0.0
        %730 = vmatpush1.msra.mxu0 0.0
        %731 = vmatprep.subr.mxu0 0.0
        %732 = vmatpush1.msra.mxu0 0.0
        %733 = vmatprep.subr.mxu0 0.0
        %734 = vmatpush1.msra.mxu0 0.0
        %735 = vmatprep.subr.mxu0 0.0
        %736 = vmatpush1.msra.mxu0 0.0
        %737 = vmatprep.subr.mxu0 0.0
        %738 = vmatpush1.msra.mxu0 0.0
        %739 = vmatprep.subr.mxu0 0.0
        %740 = vmatpush1.msra.mxu0 0.0
        %741 = vmatprep.subr.mxu0 0.0
        %742 = vmatpush1.msra.mxu0 0.0
        %743 = vmatprep.subr.mxu0 0.0
        %744 = vmatpush1.msra.mxu0 0.0
        %745 = vmatprep.subr.mxu0 0.0
        %746 = vmatpush1.msra.mxu0 0.0
        %747 = vmatprep.subr.mxu0 0.0
        %748 = vmatpush1.msra.mxu0 0.0
        %749 = vmatprep.subr.mxu0 0.0
        %750 = vmatpush1.msra.mxu0 0.0
        %751 = vmatprep.subr.mxu0 0.0
        %752 = vmatpush1.msra.mxu0 0.0
        %753 = vmatprep.subr.mxu0 0.0
        %754 = vmatpush1.msra.mxu0 0.0
        %755 = vmatprep.subr.mxu0 0.0
        %756 = vmatpush1.msra.mxu0 0.0
        %757 = vmatprep.subr.mxu0 0.0
        %758 = vmatpush1.msra.mxu0 0.0
        %759 = vmatprep.mubr.f32.mxu0 0.0
        %760 = vmatmul.mubr.f32.gmra.mrb[0].mxu0 %v595
        %v761 = vpop.f32.mrb[0].mxu0
        %v762 = vadd.f32 %v692, %v761
        %v763 = vpop.f32.mrb[0].mxu0
        %764 = vdwg.mxu0
        %v765 = vld [vmem:[%s4 + $0xa8] sm:$0x1]
        %v766 = vlaneseq
        %v767 = vshrl.u32 %v766, 7
        %v768 = vsub.s32 0, %v767
        %v769 = vrot.slane %v765, %v768
        %v770 = vadd.f32 %v762, %v769
        %v771 = vmax.f32 %v770, 0.0
        %v772 = vld [vmem:[%s5] sm:$0xff]
        %v773 = vld [vmem:[%s5 + $0x8] sm:$0xff]
        %v774 = vld [vmem:[%s5 + $0x10] sm:$0xff]
        %v775 = vld [vmem:[%s5 + $0x18] sm:$0xff]
        %v776 = vld [vmem:[%s5 + $0x20] sm:$0xff]
        %v777 = vld [vmem:[%s5 + $0x28] sm:$0xff]
        %v778 = vld [vmem:[%s5 + $0x30] sm:$0xff]
        %v779 = vld [vmem:[%s5 + $0x38] sm:$0xff]
        %v780 = vld [vmem:[%s5 + $0x40] sm:$0xff]
        %v781 = vld [vmem:[%s5 + $0x48] sm:$0xff]
        %v782 = vld [vmem:[%s5 + $0x50] sm:$0xff]
        %v783 = vld [vmem:[%s5 + $0x58] sm:$0xff]
        %v784 = vld [vmem:[%s5 + $0x60] sm:$0xff]
        %v785 = vld [vmem:[%s5 + $0x68] sm:$0xff]
        %v786 = vld [vmem:[%s5 + $0x70] sm:$0xff]
        %v787 = vld [vmem:[%s5 + $0x78] sm:$0xff]
        %v788 = vld [vmem:[%s5 + $0x80] sm:$0x1]
        %v789 = vlaneseq
        %v790 = vshrl.u32 %v789, 7
        %v791 = vsub.s32 0, %v790
        %v792 = vrot.slane %v788, %v791
        %793 = vmatprep.subr.mxu0 0.0
        %794 = vmatpush1.msra.mxu0 %v772
        %795 = vmatprep.subr.mxu0 0.0
        %796 = vmatpush1.msra.mxu0 %v773
        %797 = vmatprep.subr.mxu0 0.0
        %798 = vmatpush1.msra.mxu0 %v774
        %799 = vmatprep.subr.mxu0 0.0
        %800 = vmatpush1.msra.mxu0 %v775
        %801 = vmatprep.subr.mxu0 0.0
        %802 = vmatpush1.msra.mxu0 %v776
        %803 = vmatprep.subr.mxu0 0.0
        %804 = vmatpush1.msra.mxu0 %v777
        %805 = vmatprep.subr.mxu0 0.0
        %806 = vmatpush1.msra.mxu0 %v778
        %807 = vmatprep.subr.mxu0 0.0
        %808 = vmatpush1.msra.mxu0 %v779
        %809 = vmatprep.subr.mxu0 0.0
        %810 = vmatpush1.msra.mxu0 %v780
        %811 = vmatprep.subr.mxu0 0.0
        %812 = vmatpush1.msra.mxu0 %v781
        %813 = vmatprep.subr.mxu0 0.0
        %814 = vmatpush1.msra.mxu0 %v782
        %815 = vmatprep.subr.mxu0 0.0
        %816 = vmatpush1.msra.mxu0 %v783
        %817 = vmatprep.subr.mxu0 0.0
        %818 = vmatpush1.msra.mxu0 %v784
        %819 = vmatprep.subr.mxu0 0.0
        %820 = vmatpush1.msra.mxu0 %v785
        %821 = vmatprep.subr.mxu0 0.0
        %822 = vmatpush1.msra.mxu0 %v786
        %823 = vmatprep.subr.mxu0 0.0
        %824 = vmatpush1.msra.mxu0 %v787
        %825 = vmatprep.subr.mxu0 0.0
        %826 = vmatpush1.msra.mxu0 0.0
        %827 = vmatprep.subr.mxu0 0.0
        %828 = vmatpush1.msra.mxu0 0.0
        %829 = vmatprep.subr.mxu0 0.0
        %830 = vmatpush1.msra.mxu0 0.0
        %831 = vmatprep.subr.mxu0 0.0
        %832 = vmatpush1.msra.mxu0 0.0
        %833 = vmatprep.subr.mxu0 0.0
        %834 = vmatpush1.msra.mxu0 0.0
        %835 = vmatprep.subr.mxu0 0.0
        %836 = vmatpush1.msra.mxu0 0.0
        %837 = vmatprep.subr.mxu0 0.0
        %838 = vmatpush1.msra.mxu0 0.0
        %839 = vmatprep.subr.mxu0 0.0
        %840 = vmatpush1.msra.mxu0 0.0
        %841 = vmatprep.subr.mxu0 0.0
        %842 = vmatpush1.msra.mxu0 0.0
        %843 = vmatprep.subr.mxu0 0.0
        %844 = vmatpush1.msra.mxu0 0.0
        %845 = vmatprep.subr.mxu0 0.0
        %846 = vmatpush1.msra.mxu0 0.0
        %847 = vmatprep.subr.mxu0 0.0
        %848 = vmatpush1.msra.mxu0 0.0
        %849 = vmatprep.subr.mxu0 0.0
        %850 = vmatpush1.msra.mxu0 0.0
        %851 = vmatprep.subr.mxu0 0.0
        %852 = vmatpush1.msra.mxu0 0.0
        %853 = vmatprep.subr.mxu0 0.0
        %854 = vmatpush1.msra.mxu0 0.0
        %855 = vmatprep.subr.mxu0 0.0
        %856 = vmatpush1.msra.mxu0 0.0
        %857 = vmatprep.mubr.f32.mxu0 0.0
        %858 = vmatmul.mubr.f32.gmra.mrb[0].mxu0 %v771
        %v859 = vpop.f32.mrb[0].mxu0
        %v860 = vadd.f32 %v792, %v859
        %v861 = vpop.f32.mrb[0].mxu0
        %862 = vdwg.mxu0
        %v863 = vmax.f32 %v860, 0.0
        %v864 = vld [vmem:[%s6] sm:$0xff]
        %v865 = vld [vmem:[%s6 + $0x8] sm:$0xff]
        %v866 = vld [vmem:[%s6 + $0x10] sm:$0xff]
        %v867 = vld [vmem:[%s6 + $0x18] sm:$0xff]
        %v868 = vld [vmem:[%s6 + $0x20] sm:$0xff]
        %v869 = vld [vmem:[%s6 + $0x28] sm:$0xff]
        %v870 = vld [vmem:[%s6 + $0x30] sm:$0xff]
        %v871 = vld [vmem:[%s6 + $0x38] sm:$0xff]
        %v872 = vld [vmem:[%s6 + $0x40] sm:$0xff]
        %v873 = vld [vmem:[%s6 + $0x48] sm:$0xff]
        %v874 = vld [vmem:[%s6 + $0x50] sm:$0xff]
        %v875 = vld [vmem:[%s6 + $0x58] sm:$0xff]
        %v876 = vld [vmem:[%s6 + $0x60] sm:$0xff]
        %v877 = vld [vmem:[%s6 + $0x68] sm:$0xff]
        %v878 = vld [vmem:[%s6 + $0x70] sm:$0xff]
        %v879 = vld [vmem:[%s6 + $0x78] sm:$0xff]
        %v880 = vld [vmem:[%s6 + $0x80] sm:$0x1]
        %v881 = vlaneseq
        %v882 = vshrl.u32 %v881, 7
        %v883 = vsub.s32 0, %v882
        %v884 = vrot.slane %v880, %v883
        %885 = vmatprep.subr.mxu0 0.0
        %886 = vmatpush1.msra.mxu0 %v864
        %887 = vmatprep.subr.mxu0 0.0
        %888 = vmatpush1.msra.mxu0 %v865
        %889 = vmatprep.subr.mxu0 0.0
        %890 = vmatpush1.msra.mxu0 %v866
        %891 = vmatprep.subr.mxu0 0.0
        %892 = vmatpush1.msra.mxu0 %v867
        %893 = vmatprep.subr.mxu0 0.0
        %894 = vmatpush1.msra.mxu0 %v868
        %895 = vmatprep.subr.mxu0 0.0
        %896 = vmatpush1.msra.mxu0 %v869
        %897 = vmatprep.subr.mxu0 0.0
        %898 = vmatpush1.msra.mxu0 %v870
        %899 = vmatprep.subr.mxu0 0.0
        %900 = vmatpush1.msra.mxu0 %v871
        %901 = vmatprep.subr.mxu0 0.0
        %902 = vmatpush1.msra.mxu0 %v872
        %903 = vmatprep.subr.mxu0 0.0
        %904 = vmatpush1.msra.mxu0 %v873
        %905 = vmatprep.subr.mxu0 0.0
        %906 = vmatpush1.msra.mxu0 %v874
        %907 = vmatprep.subr.mxu0 0.0
        %908 = vmatpush1.msra.mxu0 %v875
        %909 = vmatprep.subr.mxu0 0.0
        %910 = vmatpush1.msra.mxu0 %v876
        %911 = vmatprep.subr.mxu0 0.0
        %912 = vmatpush1.msra.mxu0 %v877
        %913 = vmatprep.subr.mxu0 0.0
        %914 = vmatpush1.msra.mxu0 %v878
        %915 = vmatprep.subr.mxu0 0.0
        %916 = vmatpush1.msra.mxu0 %v879
        %917 = vmatprep.subr.mxu0 0.0
        %918 = vmatpush1.msra.mxu0 0.0
        %919 = vmatprep.subr.mxu0 0.0
        %920 = vmatpush1.msra.mxu0 0.0
        %921 = vmatprep.subr.mxu0 0.0
        %922 = vmatpush1.msra.mxu0 0.0
        %923 = vmatprep.subr.mxu0 0.0
        %924 = vmatpush1.msra.mxu0 0.0
        %925 = vmatprep.subr.mxu0 0.0
        %926 = vmatpush1.msra.mxu0 0.0
        %927 = vmatprep.subr.mxu0 0.0
        %928 = vmatpush1.msra.mxu0 0.0
        %929 = vmatprep.subr.mxu0 0.0
        %930 = vmatpush1.msra.mxu0 0.0
        %931 = vmatprep.subr.mxu0 0.0
        %932 = vmatpush1.msra.mxu0 0.0
        %933 = vmatprep.subr.mxu0 0.0
        %934 = vmatpush1.msra.mxu0 0.0
        %935 = vmatprep.subr.mxu0 0.0
        %936 = vmatpush1.msra.mxu0 0.0
        %937 = vmatprep.subr.mxu0 0.0
        %938 = vmatpush1.msra.mxu0 0.0
        %939 = vmatprep.subr.mxu0 0.0
        %940 = vmatpush1.msra.mxu0 0.0
        %941 = vmatprep.subr.mxu0 0.0
        %942 = vmatpush1.msra.mxu0 0.0
        %943 = vmatprep.subr.mxu0 0.0
        %944 = vmatpush1.msra.mxu0 0.0
        %945 = vmatprep.subr.mxu0 0.0
        %946 = vmatpush1.msra.mxu0 0.0
        %947 = vmatprep.subr.mxu0 0.0
        %948 = vmatpush1.msra.mxu0 0.0
        %949 = vmatprep.mubr.f32.mxu0 0.0
        %950 = vmatmul.mubr.f32.gmra.mrb[0].mxu0 %v863
        %v951 = vpop.f32.mrb[0].mxu0
        %v952 = vadd.f32 %v884, %v951
        %v953 = vpop.f32.mrb[0].mxu0
        %954 = vdwg.mxu0
        %v955 = vmax.f32 %v952, 0.0
        %v956 = vld [vmem:[%s7] sm:$0xff]
        %v957 = vld [vmem:[%s7 + $0x8] sm:$0xff]
        %v958 = vld [vmem:[%s7 + $0x10] sm:$0xff]
        %v959 = vld [vmem:[%s7 + $0x18] sm:$0xff]
        %v960 = vld [vmem:[%s7 + $0x20] sm:$0xff]
        %v961 = vld [vmem:[%s7 + $0x28] sm:$0xff]
        %v962 = vld [vmem:[%s7 + $0x30] sm:$0xff]
        %v963 = vld [vmem:[%s7 + $0x38] sm:$0xff]
        %v964 = vld [vmem:[%s7 + $0x40] sm:$0x1]
        %v965 = vlaneseq
        %v966 = vshrl.u32 %v965, 7
        %v967 = vsub.s32 0, %v966
        %v968 = vrot.slane %v964, %v967
        %vm969 = vcmask 523264
        %v971 = vsel %vm969, %v955, 0
        %973 = vmatprep.subr.mxu0 0.0
        %974 = vmatpush1.msra.mxu0 %v956
        %975 = vmatprep.subr.mxu0 0.0
        %976 = vmatpush1.msra.mxu0 %v957
        %977 = vmatprep.subr.mxu0 0.0
        %978 = vmatpush1.msra.mxu0 %v958
        %979 = vmatprep.subr.mxu0 0.0
        %980 = vmatpush1.msra.mxu0 %v959
        %981 = vmatprep.subr.mxu0 0.0
        %982 = vmatpush1.msra.mxu0 %v960
        %983 = vmatprep.subr.mxu0 0.0
        %984 = vmatpush1.msra.mxu0 %v961
        %985 = vmatprep.subr.mxu0 0.0
        %986 = vmatpush1.msra.mxu0 %v962
        %987 = vmatprep.subr.mxu0 0.0
        %988 = vmatpush1.msra.mxu0 %v963
        %989 = vmatprep.subr.mxu0 0.0
        %990 = vmatpush1.msra.mxu0 0.0
        %991 = vmatprep.subr.mxu0 0.0
        %992 = vmatpush1.msra.mxu0 0.0
        %993 = vmatprep.subr.mxu0 0.0
        %994 = vmatpush1.msra.mxu0 0.0
        %995 = vmatprep.subr.mxu0 0.0
        %996 = vmatpush1.msra.mxu0 0.0
        %997 = vmatprep.subr.mxu0 0.0
        %998 = vmatpush1.msra.mxu0 0.0
        %999 = vmatprep.subr.mxu0 0.0
        %1000 = vmatpush1.msra.mxu0 0.0
        %1001 = vmatprep.subr.mxu0 0.0
        %1002 = vmatpush1.msra.mxu0 0.0
        %1003 = vmatprep.subr.mxu0 0.0
        %1004 = vmatpush1.msra.mxu0 0.0
        %1005 = vmatprep.subr.mxu0 0.0
        %1006 = vmatpush1.msra.mxu0 0.0
        %1007 = vmatprep.subr.mxu0 0.0
        %1008 = vmatpush1.msra.mxu0 0.0
        %1009 = vmatprep.subr.mxu0 0.0
        %1010 = vmatpush1.msra.mxu0 0.0
        %1011 = vmatprep.subr.mxu0 0.0
        %1012 = vmatpush1.msra.mxu0 0.0
        %1013 = vmatprep.subr.mxu0 0.0
        %1014 = vmatpush1.msra.mxu0 0.0
        %1015 = vmatprep.subr.mxu0 0.0
        %1016 = vmatpush1.msra.mxu0 0.0
        %1017 = vmatprep.subr.mxu0 0.0
        %1018 = vmatpush1.msra.mxu0 0.0
        %1019 = vmatprep.subr.mxu0 0.0
        %1020 = vmatpush1.msra.mxu0 0.0
        %1021 = vmatprep.subr.mxu0 0.0
        %1022 = vmatpush1.msra.mxu0 0.0
        %1023 = vmatprep.subr.mxu0 0.0
        %1024 = vmatpush1.msra.mxu0 0.0
        %1025 = vmatprep.subr.mxu0 0.0
        %1026 = vmatpush1.msra.mxu0 0.0
        %1027 = vmatprep.subr.mxu0 0.0
        %1028 = vmatpush1.msra.mxu0 0.0
        %1029 = vmatprep.subr.mxu0 0.0
        %1030 = vmatpush1.msra.mxu0 0.0
        %1031 = vmatprep.subr.mxu0 0.0
        %1032 = vmatpush1.msra.mxu0 0.0
        %1033 = vmatprep.subr.mxu0 0.0
        %1034 = vmatpush1.msra.mxu0 0.0
        %1035 = vmatprep.subr.mxu0 0.0
        %1036 = vmatpush1.msra.mxu0 0.0
        %1037 = vmatprep.mubr.f32.mxu0 0.0
        %1038 = vmatmul.mubr.f32.gmra.mrb[0].mxu0 %v971
        %v1039 = vpop.f32.mrb[0].mxu0
        %v1040 = vadd.f32 %v968, %v1039
        %v1041 = vpop.f32.mrb[0].mxu0
        %1042 = vdwg.mxu0
        %v1043 = vmax.f32 %v1040, 0.0
        %v1044 = vld [vmem:[%s8] sm:$0xff]
        %v1045 = vld [vmem:[%s8 + $0x8] sm:$0xff]
        %v1046 = vld [vmem:[%s8 + $0x10] sm:$0xff]
        %v1047 = vld [vmem:[%s8 + $0x18] sm:$0xff]
        %v1048 = vld [vmem:[%s8 + $0x20] sm:$0x1]
        %v1049 = vlaneseq
        %v1050 = vshrl.u32 %v1049, 7
        %v1051 = vsub.s32 0, %v1050
        %v1052 = vrot.slane %v1048, %v1051
        %vm1053 = vcmask 261120
        %v1055 = vsel %vm1053, %v1043, 0
        %1057 = vmatprep.subr.mxu0 0.0
        %1058 = vmatpush1.msra.mxu0 %v1044
        %1059 = vmatprep.subr.mxu0 0.0
        %1060 = vmatpush1.msra.mxu0 %v1045
        %1061 = vmatprep.subr.mxu0 0.0
        %1062 = vmatpush1.msra.mxu0 %v1046
        %1063 = vmatprep.subr.mxu0 0.0
        %1064 = vmatpush1.msra.mxu0 %v1047
        %1065 = vmatprep.subr.mxu0 0.0
        %1066 = vmatpush1.msra.mxu0 0.0
        %1067 = vmatprep.subr.mxu0 0.0
        %1068 = vmatpush1.msra.mxu0 0.0
        %1069 = vmatprep.subr.mxu0 0.0
        %1070 = vmatpush1.msra.mxu0 0.0
        %1071 = vmatprep.subr.mxu0 0.0
        %1072 = vmatpush1.msra.mxu0 0.0
        %1073 = vmatprep.subr.mxu0 0.0
        %1074 = vmatpush1.msra.mxu0 0.0
        %1075 = vmatprep.subr.mxu0 0.0
        %1076 = vmatpush1.msra.mxu0 0.0
        %1077 = vmatprep.subr.mxu0 0.0
        %1078 = vmatpush1.msra.mxu0 0.0
        %1079 = vmatprep.subr.mxu0 0.0
        %1080 = vmatpush1.msra.mxu0 0.0
        %1081 = vmatprep.subr.mxu0 0.0
        %1082 = vmatpush1.msra.mxu0 0.0
        %1083 = vmatprep.subr.mxu0 0.0
        %1084 = vmatpush1.msra.mxu0 0.0
        %1085 = vmatprep.subr.mxu0 0.0
        %1086 = vmatpush1.msra.mxu0 0.0
        %1087 = vmatprep.subr.mxu0 0.0
        %1088 = vmatpush1.msra.mxu0 0.0
        %1089 = vmatprep.subr.mxu0 0.0
        %1090 = vmatpush1.msra.mxu0 0.0
        %1091 = vmatprep.subr.mxu0 0.0
        %1092 = vmatpush1.msra.mxu0 0.0
        %1093 = vmatprep.subr.mxu0 0.0
        %1094 = vmatpush1.msra.mxu0 0.0
        %1095 = vmatprep.subr.mxu0 0.0
        %1096 = vmatpush1.msra.mxu0 0.0
        %1097 = vmatprep.subr.mxu0 0.0
        %1098 = vmatpush1.msra.mxu0 0.0
        %1099 = vmatprep.subr.mxu0 0.0
        %1100 = vmatpush1.msra.mxu0 0.0
        %1101 = vmatprep.subr.mxu0 0.0
        %1102 = vmatpush1.msra.mxu0 0.0
        %1103 = vmatprep.subr.mxu0 0.0
        %1104 = vmatpush1.msra.mxu0 0.0
        %1105 = vmatprep.subr.mxu0 0.0
        %1106 = vmatpush1.msra.mxu0 0.0
        %1107 = vmatprep.subr.mxu0 0.0
        %1108 = vmatpush1.msra.mxu0 0.0
        %1109 = vmatprep.subr.mxu0 0.0
        %1110 = vmatpush1.msra.mxu0 0.0
        %1111 = vmatprep.subr.mxu0 0.0
        %1112 = vmatpush1.msra.mxu0 0.0
        %1113 = vmatprep.subr.mxu0 0.0
        %1114 = vmatpush1.msra.mxu0 0.0
        %1115 = vmatprep.subr.mxu0 0.0
        %1116 = vmatpush1.msra.mxu0 0.0
        %1117 = vmatprep.subr.mxu0 0.0
        %1118 = vmatpush1.msra.mxu0 0.0
        %1119 = vmatprep.subr.mxu0 0.0
        %1120 = vmatpush1.msra.mxu0 0.0
        %1121 = vmatprep.mubr.f32.mxu0 0.0
        %1122 = vmatmul.mubr.f32.gmra.mrb[0].mxu0 %v1055
        %v1123 = vpop.f32.mrb[0].mxu0
        %v1124 = vadd.f32 %v1052, %v1123
        %v1125 = vpop.f32.mrb[0].mxu0
        %1126 = vdwg.mxu0
        %v1127 = vmax.f32 %v1124, 0.0
        %v1128 = vld [vmem:[%s9] sm:$0xff]
        %v1129 = vld [vmem:[%s9 + $0x8] sm:$0xff]
        %v1130 = vld [vmem:[%s9 + $0x10] sm:$0xff]
        %v1131 = vld [vmem:[%s9 + $0x18] sm:$0xff]
        %v1132 = vld [vmem:[%s9 + $0x20] sm:$0xff]
        %v1133 = vld [vmem:[%s9 + $0x28] sm:$0xff]
        %v1134 = vld [vmem:[%s9 + $0x30] sm:$0xff]
        %v1135 = vld [vmem:[%s9 + $0x38] sm:$0xff]
        %v1137 = vsel %vm1053, %v487, 0
        %1139 = vmatprep.subr.mxu0 0.0
        %1140 = vmatpush1.msra.mxu0 %v1132
        %1141 = vmatprep.subr.mxu0 0.0
        %1142 = vmatpush1.msra.mxu0 %v1133
        %1143 = vmatprep.subr.mxu0 0.0
        %1144 = vmatpush1.msra.mxu0 %v1134
        %1145 = vmatprep.subr.mxu0 0.0
        %1146 = vmatpush1.msra.mxu0 %v1135
        %1147 = vmatprep.subr.mxu0 0.0
        %1148 = vmatpush1.msra.mxu0 0.0
        %1149 = vmatprep.subr.mxu0 0.0
        %1150 = vmatpush1.msra.mxu0 0.0
        %1151 = vmatprep.subr.mxu0 0.0
        %1152 = vmatpush1.msra.mxu0 0.0
        %1153 = vmatprep.subr.mxu0 0.0
        %1154 = vmatpush1.msra.mxu0 0.0
        %1155 = vmatprep.subr.mxu0 0.0
        %1156 = vmatpush1.msra.mxu0 0.0
        %1157 = vmatprep.subr.mxu0 0.0
        %1158 = vmatpush1.msra.mxu0 0.0
        %1159 = vmatprep.subr.mxu0 0.0
        %1160 = vmatpush1.msra.mxu0 0.0
        %1161 = vmatprep.subr.mxu0 0.0
        %1162 = vmatpush1.msra.mxu0 0.0
        %1163 = vmatprep.subr.mxu0 0.0
        %1164 = vmatpush1.msra.mxu0 0.0
        %1165 = vmatprep.subr.mxu0 0.0
        %1166 = vmatpush1.msra.mxu0 0.0
        %1167 = vmatprep.subr.mxu0 0.0
        %1168 = vmatpush1.msra.mxu0 0.0
        %1169 = vmatprep.subr.mxu0 0.0
        %1170 = vmatpush1.msra.mxu0 0.0
        %1171 = vmatprep.subr.mxu0 0.0
        %1172 = vmatpush1.msra.mxu0 0.0
        %1173 = vmatprep.subr.mxu0 0.0
        %1174 = vmatpush1.msra.mxu0 0.0
        %1175 = vmatprep.subr.mxu0 0.0
        %1176 = vmatpush1.msra.mxu0 0.0
        %1177 = vmatprep.subr.mxu0 0.0
        %1178 = vmatpush1.msra.mxu0 0.0
        %1179 = vmatprep.subr.mxu0 0.0
        %1180 = vmatpush1.msra.mxu0 0.0
        %1181 = vmatprep.subr.mxu0 0.0
        %1182 = vmatpush1.msra.mxu0 0.0
        %1183 = vmatprep.subr.mxu0 0.0
        %1184 = vmatpush1.msra.mxu0 0.0
        %1185 = vmatprep.subr.mxu0 0.0
        %1186 = vmatpush1.msra.mxu0 0.0
        %1187 = vmatprep.subr.mxu0 0.0
        %1188 = vmatpush1.msra.mxu0 0.0
        %1189 = vmatprep.subr.mxu0 0.0
        %1190 = vmatpush1.msra.mxu0 0.0
        %1191 = vmatprep.subr.mxu0 0.0
        %1192 = vmatpush1.msra.mxu0 0.0
        %1193 = vmatprep.subr.mxu0 0.0
        %1194 = vmatpush1.msra.mxu0 0.0
        %1195 = vmatprep.subr.mxu0 0.0
        %1196 = vmatpush1.msra.mxu0 0.0
        %1197 = vmatprep.subr.mxu0 0.0
        %1198 = vmatpush1.msra.mxu0 0.0
        %1199 = vmatprep.subr.mxu0 0.0
        %1200 = vmatpush1.msra.mxu0 0.0
        %1201 = vmatprep.subr.mxu0 0.0
        %1202 = vmatpush1.msra.mxu0 0.0
        %1203 = vmatprep.mubr.f32.mxu0 0.0
        %1204 = vmatmul.mubr.f32.gmra.mrb[0].mxu0 %v1137
        %v1205 = vpop.f32.mrb[0].mxu0
        %v1206 = vadd.f32 0.0, %v1205
        %v1207 = vpop.f32.mrb[0].mxu0
        %1208 = vdwg.mxu0
        %v1210 = vsel %vm1053, %v1127, 0
        %1212 = vmatprep.subr.mxu0 0.0
        %1213 = vmatpush1.msra.mxu0 %v1128
        %1214 = vmatprep.subr.mxu0 0.0
        %1215 = vmatpush1.msra.mxu0 %v1129
        %1216 = vmatprep.subr.mxu0 0.0
        %1217 = vmatpush1.msra.mxu0 %v1130
        %1218 = vmatprep.subr.mxu0 0.0
        %1219 = vmatpush1.msra.mxu0 %v1131
        %1220 = vmatprep.subr.mxu0 0.0
        %1221 = vmatpush1.msra.mxu0 0.0
        %1222 = vmatprep.subr.mxu0 0.0
        %1223 = vmatpush1.msra.mxu0 0.0
        %1224 = vmatprep.subr.mxu0 0.0
        %1225 = vmatpush1.msra.mxu0 0.0
        %1226 = vmatprep.subr.mxu0 0.0
        %1227 = vmatpush1.msra.mxu0 0.0
        %1228 = vmatprep.subr.mxu0 0.0
        %1229 = vmatpush1.msra.mxu0 0.0
        %1230 = vmatprep.subr.mxu0 0.0
        %1231 = vmatpush1.msra.mxu0 0.0
        %1232 = vmatprep.subr.mxu0 0.0
        %1233 = vmatpush1.msra.mxu0 0.0
        %1234 = vmatprep.subr.mxu0 0.0
        %1235 = vmatpush1.msra.mxu0 0.0
        %1236 = vmatprep.subr.mxu0 0.0
        %1237 = vmatpush1.msra.mxu0 0.0
        %1238 = vmatprep.subr.mxu0 0.0
        %1239 = vmatpush1.msra.mxu0 0.0
        %1240 = vmatprep.subr.mxu0 0.0
        %1241 = vmatpush1.msra.mxu0 0.0
        %1242 = vmatprep.subr.mxu0 0.0
        %1243 = vmatpush1.msra.mxu0 0.0
        %1244 = vmatprep.subr.mxu0 0.0
        %1245 = vmatpush1.msra.mxu0 0.0
        %1246 = vmatprep.subr.mxu0 0.0
        %1247 = vmatpush1.msra.mxu0 0.0
        %1248 = vmatprep.subr.mxu0 0.0
        %1249 = vmatpush1.msra.mxu0 0.0
        %1250 = vmatprep.subr.mxu0 0.0
        %1251 = vmatpush1.msra.mxu0 0.0
        %1252 = vmatprep.subr.mxu0 0.0
        %1253 = vmatpush1.msra.mxu0 0.0
        %1254 = vmatprep.subr.mxu0 0.0
        %1255 = vmatpush1.msra.mxu0 0.0
        %1256 = vmatprep.subr.mxu0 0.0
        %1257 = vmatpush1.msra.mxu0 0.0
        %1258 = vmatprep.subr.mxu0 0.0
        %1259 = vmatpush1.msra.mxu0 0.0
        %1260 = vmatprep.subr.mxu0 0.0
        %1261 = vmatpush1.msra.mxu0 0.0
        %1262 = vmatprep.subr.mxu0 0.0
        %1263 = vmatpush1.msra.mxu0 0.0
        %1264 = vmatprep.subr.mxu0 0.0
        %1265 = vmatpush1.msra.mxu0 0.0
        %1266 = vmatprep.subr.mxu0 0.0
        %1267 = vmatpush1.msra.mxu0 0.0
        %1268 = vmatprep.subr.mxu0 0.0
        %1269 = vmatpush1.msra.mxu0 0.0
        %1270 = vmatprep.subr.mxu0 0.0
        %1271 = vmatpush1.msra.mxu0 0.0
        %1272 = vmatprep.subr.mxu0 0.0
        %1273 = vmatpush1.msra.mxu0 0.0
        %1274 = vmatprep.subr.mxu0 0.0
        %1275 = vmatpush1.msra.mxu0 0.0
        %1276 = vmatprep.mubr.f32.mxu0 0.0
        %1277 = vmatmul.mubr.f32.gmra.mrb[0].mxu0 %v1210
        %v1278 = vpop.f32.mrb[0].mxu0
        %v1279 = vadd.f32 %v1206, %v1278
        %v1280 = vpop.f32.mrb[0].mxu0
        %1281 = vdwg.mxu0
        %v1282 = vld [vmem:[%s9 + $0x40] sm:$0x1]
        %v1283 = vlaneseq
        %v1284 = vshrl.u32 %v1283, 7
        %v1285 = vsub.s32 0, %v1284
        %v1286 = vrot.slane %v1282, %v1285
        %v1287 = vadd.f32 %v1279, %v1286
        %v1288 = vxor.u32 %v1287, 2147483648
        %v1289 = vmul.f32 %v1288, 1.442695
        %v1290 = vpow.pop %v1289
        %v1291 = vadd.f32 %v1290, 1.0
        %v1292 = vrcp.pop %v1291
        %v1293 = vmul.f32 1.0, %v1292
        %v1294 = vtanh.pop %v1287
        %v1295 = vmul.f32 %v1293, %v487
        %1297 = vrot.lane.b32.xlu0 %v1294, 64
        %v1298 = vpop.permute.xlu0 %1297
        %v1300 = vmul.f32 %v1293, %v1298
        %1302 = vrot.lane.b32.xlu0 %v1300, 32
        %v1303 = vpop.permute.xlu0 %1302
        %v1305 = vadd.f32 %v1295, %v1303
        %v1306 = vtanh.pop %v1305
        %1308 = vrot.lane.b32.xlu0 %v1306, 64
        %v1309 = vpop.permute.xlu0 %1308
        %v1311 = vmul.f32 %v1293, %v1309
        %v1312 = vld [vmem:[%s10] sm:$0xff]
        %v1313 = vld [vmem:[%s10 + $0x8] sm:$0xff]
        %v1314 = vld [vmem:[%s10 + $0x10] sm:$0xff]
        %v1315 = vld [vmem:[%s10 + $0x18] sm:$0xff]
        %v1316 = vld [vmem:[%s10 + $0x20] sm:$0x1]
        %v1317 = vlaneseq
        %v1318 = vshrl.u32 %v1317, 7
        %v1319 = vsub.s32 0, %v1318
        %v1320 = vrot.slane %v1316, %v1319
        %1322 = vrot.lane.b32.xlu0 %v1311, 32
        %v1323 = vpop.permute.xlu0 %1322
        %v1324 = vsel %vm1053, %v1323, 0
        %1326 = vmatprep.subr.mxu0 0.0
        %1327 = vmatpush1.msra.mxu0 %v1312
        %1328 = vmatprep.subr.mxu0 0.0
        %1329 = vmatpush1.msra.mxu0 %v1313
        %1330 = vmatprep.subr.mxu0 0.0
        %1331 = vmatpush1.msra.mxu0 %v1314
        %1332 = vmatprep.subr.mxu0 0.0
        %1333 = vmatpush1.msra.mxu0 %v1315
        %1334 = vmatprep.subr.mxu0 0.0
        %1335 = vmatpush1.msra.mxu0 0.0
        %1336 = vmatprep.subr.mxu0 0.0
        %1337 = vmatpush1.msra.mxu0 0.0
        %1338 = vmatprep.subr.mxu0 0.0
        %1339 = vmatpush1.msra.mxu0 0.0
        %1340 = vmatprep.subr.mxu0 0.0
        %1341 = vmatpush1.msra.mxu0 0.0
        %1342 = vmatprep.subr.mxu0 0.0
        %1343 = vmatpush1.msra.mxu0 0.0
        %1344 = vmatprep.subr.mxu0 0.0
        %1345 = vmatpush1.msra.mxu0 0.0
        %1346 = vmatprep.subr.mxu0 0.0
        %1347 = vmatpush1.msra.mxu0 0.0
        %1348 = vmatprep.subr.mxu0 0.0
        %1349 = vmatpush1.msra.mxu0 0.0
        %1350 = vmatprep.subr.mxu0 0.0
        %1351 = vmatpush1.msra.mxu0 0.0
        %1352 = vmatprep.subr.mxu0 0.0
        %1353 = vmatpush1.msra.mxu0 0.0
        %1354 = vmatprep.subr.mxu0 0.0
        %1355 = vmatpush1.msra.mxu0 0.0
        %1356 = vmatprep.subr.mxu0 0.0
        %1357 = vmatpush1.msra.mxu0 0.0
        %1358 = vmatprep.subr.mxu0 0.0
        %1359 = vmatpush1.msra.mxu0 0.0
        %1360 = vmatprep.subr.mxu0 0.0
        %1361 = vmatpush1.msra.mxu0 0.0
        %1362 = vmatprep.subr.mxu0 0.0
        %1363 = vmatpush1.msra.mxu0 0.0
        %1364 = vmatprep.subr.mxu0 0.0
        %1365 = vmatpush1.msra.mxu0 0.0
        %1366 = vmatprep.subr.mxu0 0.0
        %1367 = vmatpush1.msra.mxu0 0.0
        %1368 = vmatprep.subr.mxu0 0.0
        %1369 = vmatpush1.msra.mxu0 0.0
        %1370 = vmatprep.subr.mxu0 0.0
        %1371 = vmatpush1.msra.mxu0 0.0
        %1372 = vmatprep.subr.mxu0 0.0
        %1373 = vmatpush1.msra.mxu0 0.0
        %1374 = vmatprep.subr.mxu0 0.0
        %1375 = vmatpush1.msra.mxu0 0.0
        %1376 = vmatprep.subr.mxu0 0.0
        %1377 = vmatpush1.msra.mxu0 0.0
        %1378 = vmatprep.subr.mxu0 0.0
        %1379 = vmatpush1.msra.mxu0 0.0
        %1380 = vmatprep.subr.mxu0 0.0
        %1381 = vmatpush1.msra.mxu0 0.0
        %1382 = vmatprep.subr.mxu0 0.0
        %1383 = vmatpush1.msra.mxu0 0.0
        %1384 = vmatprep.subr.mxu0 0.0
        %1385 = vmatpush1.msra.mxu0 0.0
        %1386 = vmatprep.subr.mxu0 0.0
        %1387 = vmatpush1.msra.mxu0 0.0
        %1388 = vmatprep.subr.mxu0 0.0
        %1389 = vmatpush1.msra.mxu0 0.0
        %1390 = vmatprep.mubr.f32.mxu0 0.0
        %1391 = vmatmul.mubr.f32.gmra.mrb[0].mxu0 %v1324
        %v1392 = vpop.f32.mrb[0].mxu0
        %v1393 = vadd.f32 %v1320, %v1392
        %v1394 = vpop.f32.mrb[0].mxu0
        %1395 = vdwg.mxu0
        %v1396 = vmax.f32 %v1393, 0.0
        %v1397 = vld [vmem:[%s11] sm:$0xff]
        %v1398 = vld [vmem:[%s11 + $0x8] sm:$0xff]
        %v1399 = vld [vmem:[%s11 + $0x10] sm:$0xff]
        %v1400 = vld [vmem:[%s11 + $0x18] sm:$0xff]
        %v1401 = vld [vmem:[%s11 + $0x20] sm:$0x1]
        %v1402 = vlaneseq
        %v1403 = vshrl.u32 %v1402, 7
        %v1404 = vsub.s32 0, %v1403
        %v1405 = vrot.slane %v1401, %v1404
        %v1407 = vsel %vm1053, %v1396, 0
        %1409 = vmatprep.subr.mxu0 0.0
        %1410 = vmatpush1.msra.mxu0 %v1397
        %1411 = vmatprep.subr.mxu0 0.0
        %1412 = vmatpush1.msra.mxu0 %v1398
        %1413 = vmatprep.subr.mxu0 0.0
        %1414 = vmatpush1.msra.mxu0 %v1399
        %1415 = vmatprep.subr.mxu0 0.0
        %1416 = vmatpush1.msra.mxu0 %v1400
        %1417 = vmatprep.subr.mxu0 0.0
        %1418 = vmatpush1.msra.mxu0 0.0
        %1419 = vmatprep.subr.mxu0 0.0
        %1420 = vmatpush1.msra.mxu0 0.0
        %1421 = vmatprep.subr.mxu0 0.0
        %1422 = vmatpush1.msra.mxu0 0.0
        %1423 = vmatprep.subr.mxu0 0.0
        %1424 = vmatpush1.msra.mxu0 0.0
        %1425 = vmatprep.subr.mxu0 0.0
        %1426 = vmatpush1.msra.mxu0 0.0
        %1427 = vmatprep.subr.mxu0 0.0
        %1428 = vmatpush1.msra.mxu0 0.0
        %1429 = vmatprep.subr.mxu0 0.0
        %1430 = vmatpush1.msra.mxu0 0.0
        %1431 = vmatprep.subr.mxu0 0.0
        %1432 = vmatpush1.msra.mxu0 0.0
        %1433 = vmatprep.subr.mxu0 0.0
        %1434 = vmatpush1.msra.mxu0 0.0
        %1435 = vmatprep.subr.mxu0 0.0
        %1436 = vmatpush1.msra.mxu0 0.0
        %1437 = vmatprep.subr.mxu0 0.0
        %1438 = vmatpush1.msra.mxu0 0.0
        %1439 = vmatprep.subr.mxu0 0.0
        %1440 = vmatpush1.msra.mxu0 0.0
        %1441 = vmatprep.subr.mxu0 0.0
        %1442 = vmatpush1.msra.mxu0 0.0
        %1443 = vmatprep.subr.mxu0 0.0
        %1444 = vmatpush1.msra.mxu0 0.0
        %1445 = vmatprep.subr.mxu0 0.0
        %1446 = vmatpush1.msra.mxu0 0.0
        %1447 = vmatprep.subr.mxu0 0.0
        %1448 = vmatpush1.msra.mxu0 0.0
        %1449 = vmatprep.subr.mxu0 0.0
        %1450 = vmatpush1.msra.mxu0 0.0
        %1451 = vmatprep.subr.mxu0 0.0
        %1452 = vmatpush1.msra.mxu0 0.0
        %1453 = vmatprep.subr.mxu0 0.0
        %1454 = vmatpush1.msra.mxu0 0.0
        %1455 = vmatprep.subr.mxu0 0.0
        %1456 = vmatpush1.msra.mxu0 0.0
        %1457 = vmatprep.subr.mxu0 0.0
        %1458 = vmatpush1.msra.mxu0 0.0
        %1459 = vmatprep.subr.mxu0 0.0
        %1460 = vmatpush1.msra.mxu0 0.0
        %1461 = vmatprep.subr.mxu0 0.0
        %1462 = vmatpush1.msra.mxu0 0.0
        %1463 = vmatprep.subr.mxu0 0.0
        %1464 = vmatpush1.msra.mxu0 0.0
        %1465 = vmatprep.subr.mxu0 0.0
        %1466 = vmatpush1.msra.mxu0 0.0
        %1467 = vmatprep.subr.mxu0 0.0
        %1468 = vmatpush1.msra.mxu0 0.0
        %1469 = vmatprep.subr.mxu0 0.0
        %1470 = vmatpush1.msra.mxu0 0.0
        %1471 = vmatprep.subr.mxu0 0.0
        %1472 = vmatpush1.msra.mxu0 0.0
        %1473 = vmatprep.mubr.f32.mxu0 0.0
        %1474 = vmatmul.mubr.f32.gmra.mrb[0].mxu0 %v1407
        %v1475 = vpop.f32.mrb[0].mxu0
        %v1476 = vadd.f32 %v1405, %v1475
        %v1477 = vpop.f32.mrb[0].mxu0
        %1478 = vdwg.mxu0
        %v1479 = vxor.u32 %v1476, 2147483648
        %v1480 = vmul.f32 %v1479, 1.442695
        %v1481 = vpow.pop %v1480
        %v1482 = vadd.f32 %v1481, 1.0
        %v1483 = vrcp.pop %v1482
        %v1484 = vmul.f32 1.0, %v1483
        %1487 = vrot.lane.b32.xlu0 %v1484, 64
        %v1488 = vpop.permute.xlu0 %1487
        %1490 = vrot.lane.b32.xlu0 %v1484, 96
        %v1491 = vpop.permute.xlu0 %1490
        %v1493 = vsel %vm1053, %v1323, %v1305
        %v1494 = vsel %vm969, %v1493, %v1488
        %vm1495 = vcmask 785408
        %v1496 = vsel %vm1495, %v1494, %v1491
        %1497 = vst [vmem:[%s483] sm:$0xff] %v1496
        %p1498 = scmp.lt.s32.totalorder %s29, 1
        %s1499 = scalar_select %p1498, %s29, 1
        %s1500 = smul.addr %s1499, 8
        %s1501 = scalar_lea.vmem %s12, %s1500
        // Predicated region
        $region77: #{pairwise_blstm_forward.1} parent=67 // pred_check
          %p1502 = pneg %p314
        $region78: #{pairwise_blstm_forward.1} parent=67 // pred_check_branch
          %1504 = sbr.rel (%p1502) target = $region80
        $region79: #{pairwise_blstm_forward.1} parent=67 // pred_region
          _
        $region80: #{pairwise_blstm_forward.1} parent=67 // pred_fallthru
          _
      $region68: #{pairwise_blstm_forward.1} parent=5 // pred_fallthru
        _
      %p1505 = scmp.le.s32.totalorder 2, %s24
      // Predicated region
      $region81: #{pairwise_blstm_forward.1} parent=5 // pred_check
        %p1506 = pneg %p1505
      $region82: #{pairwise_blstm_forward.1} parent=5 // pred_check_branch
        %1508 = sbr.rel (%p1506) target = $region84
      $region83: #{pairwise_blstm_forward.1} parent=5 // pred_region
        %s1509 = ssub.s32 %s24, 2
        // Predicated region
        $region85: #{pairwise_blstm_forward.1} parent=83 // pred_check
          %p1510 = pneg %p320
        $region86: #{pairwise_blstm_forward.1} parent=83 // pred_check_branch
          %1512 = sbr.rel (%p1510) target = $region88
        $region87: #{pairwise_blstm_forward.1} parent=83 // pred_region
          %p1513 = scmp.lt.s32.totalorder %s30, 1
          %s1514 = scalar_select %p1513, %s30, 1
          %s1515 = smul.addr %s1514, 8
          %s1516 = scalar_lea.vmem %s12, %s1515
        $region88: #{pairwise_blstm_forward.1} parent=83 // pred_fallthru
          _
      $region84: #{pairwise_blstm_forward.1} parent=5 // pred_fallthru
        _
    $region6: #{pairwise_blstm_forward.1} parent=1 // loop_footer
      %s28 = sadd.s32 1, %s24
    $region7: #{pairwise_blstm_forward.1} parent=1 // loop_footer_branch
      %23 = sbr.rel target = $region3
    $region8: #{pairwise_blstm_forward.1} parent=1 // loop_exit
      _
    %1517 = vsyncpa [#allocation3], 1
    %s1518 = scalar_lea.sflag [#allocation3], 1
    %1519 = vsyncpa %s1518, 1
    %1520 = vsyncpa [#allocation5], 1
    %s1521 = scalar_lea.sflag [#allocation5], 1
    %1522 = vsyncpa %s1521, 1

</llo_original>
